<compile_context>
chip_gen: v7x
topology: tpu7x:2x2x1
jax: 0.10.0
libtpu: 0.0.40
codegen_flags: <defaults>
</compile_context>

<pallas_src>
import functools

import jax
import jax.numpy as jnp
from jax.experimental import pallas as pl
from jax.experimental.pallas import tpu as pltpu


# ----------------------------------------------------------------------------
# Pallas kernel: (Cout, TM) = wT @ patchesT  +  per-channel shift  (+ ReLU)
# ----------------------------------------------------------------------------
def conv_mm_kernel(wt_ref, p_ref, shift_ref, o_ref, *, relu):
    # wt_ref   : (Cout, K)   bf16, BN scale already folded in
    # p_ref    : (K, TM)     bf16 im2col patches, spatial dim on lanes
    # shift_ref: (Cout, 1)   f32 per-channel shift (bias / folded BN)
    # o_ref    : (Cout, TM)  lane-dense output tile
    acc = jnp.dot(wt_ref[...], p_ref[...], preferred_element_type=jnp.float32)
    y = acc + shift_ref[...]
    if relu:
        y = jnp.maximum(y, 0.0)
    o_ref[...] = y.astype(o_ref.dtype)


def conv_mm_pallas(wt, patches_t, shift, *, relu, out_dtype):
    Cout, K = wt.shape
    K2, M = patches_t.shape
    assert K == K2

    # Pad M up to a multiple of 128 (lane granule) and pick a large lane tile.
    M_pad = ((M + 127) // 128) * 128
    TM = 128
    for t in (1024, 512, 256, 128):
        if M_pad % t == 0:
            TM = t
            break
    if M_pad != M:
        patches_t = jnp.pad(patches_t, ((0, 0), (0, M_pad - M)))

    out_bytes = 2 if out_dtype == jnp.bfloat16 else 4
    cost = pl.CostEstimate(
        flops=2 * Cout * K * M_pad,
        transcendentals=0,
        bytes_accessed=(Cout * K * 2 + K * M_pad * 2 + Cout * 4
                        + Cout * M_pad * out_bytes),
    )

    out = pl.pallas_call(
        functools.partial(conv_mm_kernel, relu=relu),
        out_shape=jax.ShapeDtypeStruct((Cout, M_pad), out_dtype),
        grid=(M_pad // TM,),
        in_specs=[
            pl.BlockSpec((Cout, K), lambda i: (0, 0)),   # weights, resident
            pl.BlockSpec((K, TM), lambda i: (0, i)),     # patch tile
            pl.BlockSpec((Cout, 1), lambda i: (0, 0)),   # shift, resident
        ],
        out_specs=pl.BlockSpec((Cout, TM), lambda i: (0, i)),
        compiler_params=pltpu.CompilerParams(
            dimension_semantics=("parallel",)),
        cost_estimate=cost,
    )(wt, patches_t, shift)
    return out[:, :M]


# ----------------------------------------------------------------------------
# JAX glue: im2col patch extraction in (K, M) layout (static strided slices)
# ----------------------------------------------------------------------------
def extract_patches_t(x_nhwc, k, stride, pad):
    """x_nhwc: (N, H, W, C) -> patchesT (k*k*C, N*Ho*Wo) in (kh, kw, cin) K-order."""
    xp = jnp.pad(x_nhwc, ((0, 0), (pad, pad), (pad, pad), (0, 0)))
    N, Hp, Wp, C = xp.shape
    Ho = (Hp - k) // stride + 1
    Wo = (Wp - k) // stride + 1
    rows = []
    for i in range(k):
        for j in range(k):
            sl = xp[:, i:i + stride * Ho:stride, j:j + stride * Wo:stride, :]
            rows.append(jnp.transpose(sl, (3, 0, 1, 2)).reshape(C, N * Ho * Wo))
    patches_t = jnp.concatenate(rows, axis=0)  # (k*k*C, M)
    return patches_t, (N, Ho, Wo)


# Layer configs mirroring the PyTorch Sequential:
#   (cin, cout, ksize, stride, pad, has_bn, has_relu)
LAYER_CFG = [
    (3, 8, 3, 1, 1, True, True),
    (8, 8, 3, 1, 1, True, True),
    (8, 16, 5, 2, 2, True, True),
    (16, 16, 3, 1, 1, True, True),
    (16, 16, 3, 1, 1, True, True),
    (16, 32, 5, 2, 2, True, True),
    (32, 32, 3, 1, 1, True, True),
    (32, 32, 3, 1, 1, True, True),
    (32, 32, 3, 1, 1, False, False),
]

BN_EPS = 1e-5


def init_params(key):
    """Deterministic synthetic params (PyTorch shapes: conv OIHW, BN per-channel)."""
    params = []
    for (cin, cout, k, _s, _p, has_bn, _r) in LAYER_CFG:
        key, kw_, kb_, kg_, kbe_, km_, kv_ = jax.random.split(key, 7)
        w = 0.1 * jax.random.normal(kw_, (cout, cin, k, k), dtype=jnp.float32)  # OIHW
        b = 0.05 * jax.random.normal(kb_, (cout,), dtype=jnp.float32)
        if has_bn:
            gamma = 1.0 + 0.1 * jax.random.normal(kg_, (cout,), dtype=jnp.float32)
            beta = 0.1 * jax.random.normal(kbe_, (cout,), dtype=jnp.float32)
            rmean = 0.1 * jax.random.normal(km_, (cout,), dtype=jnp.float32)
            rvar = 1.0 + 0.1 * jnp.abs(jax.random.normal(kv_, (cout,), dtype=jnp.float32))
        else:
            gamma = beta = rmean = rvar = None
        params.append(dict(w=w, b=b, gamma=gamma, beta=beta, rmean=rmean, rvar=rvar))
    return params


def feature_net_forward(x_nchw, params):
    """Forward pass equivalent to FeatureNet.forward (BN in eval mode)."""
    x = jnp.transpose(x_nchw, (0, 2, 3, 1)).astype(jnp.bfloat16)  # NCHW -> NHWC, bf16
    n_layers = len(LAYER_CFG)
    for li, (cfg, p) in enumerate(zip(LAYER_CFG, params)):
        cin, cout, k, stride, pad, has_bn, has_relu = cfg
        patches_t, (N, Ho, Wo) = extract_patches_t(x, k, stride, pad)

        # OIHW -> (Cout, KH, KW, Cin) -> (Cout, K), matching (kh, kw, cin) patch order
        wt = jnp.transpose(p["w"], (0, 2, 3, 1)).reshape(cout, k * k * cin)
        if has_bn:
            scale = p["gamma"] / jnp.sqrt(p["rvar"] + BN_EPS)
            shift = p["beta"] + (p["b"] - p["rmean"]) * scale
            wt = wt * scale[:, None]          # fold BN scale into weights
        else:
            shift = p["b"]

        is_last = li == n_layers - 1
        out_dtype = jnp.float32 if is_last else jnp.bfloat16
        out = conv_mm_pallas(
            wt.astype(jnp.bfloat16),
            patches_t.astype(jnp.bfloat16),
            shift.reshape(cout, 1).astype(jnp.float32),
            relu=has_relu,
            out_dtype=out_dtype,
        )  # (Cout, M)

        out = out.reshape(cout, N, Ho, Wo)
        if is_last:
            return jnp.transpose(out, (1, 0, 2, 3))  # -> NCHW
        x = jnp.transpose(out, (1, 2, 3, 0))         # -> NHWC for next layer


if __name__ == "__main__":
    key = jax.random.PRNGKey(0)
    key_x, key_p = jax.random.split(key)
    # Small input consistent with the module: N=2, C=3, H=W=16 (NCHW like PyTorch)
    x = jax.random.normal(key_x, (2, 3, 16, 16), dtype=jnp.float32)
    params = init_params(key_p)

    out = jax.jit(feature_net_forward)(x, params)
    out = jax.block_until_ready(out)

    assert out.shape == (2, 32, 4, 4), out.shape  # two stride-2 convs: 16 -> 8 -> 4
    assert jnp.all(jnp.isfinite(out))
    print("KERNEL_OK")
</pallas_src>

<mosaic_0001>
module attributes {stable_mosaic.version = 11 : i64} {
  func.func @conv_mm_kernel(%arg0: i32, %arg1: memref<8x27xbf16, #tpu.memory_space<vmem>>, %arg2: memref<27x512xbf16, #tpu.memory_space<vmem>>, %arg3: memref<8x1xf32, #tpu.memory_space<vmem>>, %arg4: memref<8x512xbf16, #tpu.memory_space<vmem>>) attributes {dimension_semantics = [#tpu.dimension_semantics<parallel>], iteration_bounds = array<i64: 1>, scalar_prefetch = 0 : i64, scratch_operands = 0 : i64, tpu.core_type = #tpu.core_type<tc>, window_params = [{pipeline_mode = #tpu.pipeline_mode<synchronous>, transform_indices = @transform_0, window_bounds = array<i64: 8, 27>}, {transform_indices = @transform_1, window_bounds = array<i64: 27, 512>}, {pipeline_mode = #tpu.pipeline_mode<synchronous>, transform_indices = @transform_2, window_bounds = array<i64: 8, 1>}, {transform_indices = @transform_3, window_bounds = array<i64: 8, 512>}]} {
    %c0 = arith.constant 0 : index
    %c0_0 = arith.constant 0 : index
    %0 = vector.load %arg1[%c0, %c0_0] : memref<8x27xbf16, #tpu.memory_space<vmem>>, vector<8x27xbf16>
    %c0_1 = arith.constant 0 : index
    %c0_2 = arith.constant 0 : index
    %1 = vector.load %arg2[%c0_1, %c0_2] : memref<27x512xbf16, #tpu.memory_space<vmem>>, vector<27x512xbf16>
    %cst = arith.constant dense<0.000000e+00> : vector<8x512xf32>
    %2 = tpu.matmul %0, %1, %cst {dimension_numbers = #tpu.dot_dimension_numbers<[1], [0], [0], [1], [0, 0, 1, 1], [], []>} : vector<8x27xbf16>, vector<27x512xbf16>, vector<8x512xf32> -> vector<8x512xf32>
    %c0_3 = arith.constant 0 : index
    %c0_4 = arith.constant 0 : index
    %3 = vector.load %arg3[%c0_3, %c0_4] : memref<8x1xf32, #tpu.memory_space<vmem>>, vector<8x1xf32>
    %4 = vector.broadcast %3 : vector<8x1xf32> to vector<8x512xf32>
    %5 = arith.addf %2, %4 : vector<8x512xf32>
    %cst_5 = arith.constant 0.000000e+00 : f32
    %6 = vector.broadcast %cst_5 : f32 to vector<8x512xf32>
    %7 = arith.maximumf %5, %6 : vector<8x512xf32>
    %8 = arith.truncf %7 : vector<8x512xf32> to vector<8x512xbf16>
    %c0_6 = arith.constant 0 : index
    %c0_7 = arith.constant 0 : index
    %9 = vector.load %arg4[%c0_6, %c0_7] : memref<8x512xbf16, #tpu.memory_space<vmem>>, vector<8x512xbf16>
    tpu.vector_store %arg4[%c0_6, %c0_7], %8 {strides = array<i32>} : memref<8x512xbf16, #tpu.memory_space<vmem>>, vector<8x512xbf16>,
    return
  }
  func.func @transform_0(%arg0: i32) -> (i32, i32) {
    %c0_i32 = arith.constant 0 : i32
    %c0_i32_0 = arith.constant 0 : i32
    %c0_i32_1 = arith.constant 0 : i32
    return %c0_i32, %c0_i32_0 : i32, i32
  }
  func.func @transform_1(%arg0: i32) -> (i32, i32) {
    %c0_i32 = arith.constant 0 : i32
    %c0_i32_0 = arith.constant 0 : i32
    return %c0_i32, %arg0 : i32, i32
  }
  func.func @transform_2(%arg0: i32) -> (i32, i32) {
    %c0_i32 = arith.constant 0 : i32
    %c0_i32_0 = arith.constant 0 : i32
    %c0_i32_1 = arith.constant 0 : i32
    return %c0_i32, %c0_i32_0 : i32, i32
  }
  func.func @transform_3(%arg0: i32) -> (i32, i32) {
    %c0_i32 = arith.constant 0 : i32
    %c0_i32_0 = arith.constant 0 : i32
    return %c0_i32, %arg0 : i32, i32
  }
}

module attributes {stable_mosaic.version = 11 : i64} {
  func.func @conv_mm_kernel(%arg0: i32, %arg1: memref<8x72xbf16, #tpu.memory_space<vmem>>, %arg2: memref<72x512xbf16, #tpu.memory_space<vmem>>, %arg3: memref<8x1xf32, #tpu.memory_space<vmem>>, %arg4: memref<8x512xbf16, #tpu.memory_space<vmem>>) attributes {dimension_semantics = [#tpu.dimension_semantics<parallel>], iteration_bounds = array<i64: 1>, scalar_prefetch = 0 : i64, scratch_operands = 0 : i64, tpu.core_type = #tpu.core_type<tc>, window_params = [{pipeline_mode = #tpu.pipeline_mode<synchronous>, transform_indices = @transform_0, window_bounds = array<i64: 8, 72>}, {transform_indices = @transform_1, window_bounds = array<i64: 72, 512>}, {pipeline_mode = #tpu.pipeline_mode<synchronous>, transform_indices = @transform_2, window_bounds = array<i64: 8, 1>}, {transform_indices = @transform_3, window_bounds = array<i64: 8, 512>}]} {
    %c0 = arith.constant 0 : index
    %c0_0 = arith.constant 0 : index
    %0 = vector.load %arg1[%c0, %c0_0] : memref<8x72xbf16, #tpu.memory_space<vmem>>, vector<8x72xbf16>
    %c0_1 = arith.constant 0 : index
    %c0_2 = arith.constant 0 : index
    %1 = vector.load %arg2[%c0_1, %c0_2] : memref<72x512xbf16, #tpu.memory_space<vmem>>, vector<72x512xbf16>
    %cst = arith.constant dense<0.000000e+00> : vector<8x512xf32>
    %2 = tpu.matmul %0, %1, %cst {dimension_numbers = #tpu.dot_dimension_numbers<[1], [0], [0], [1], [0, 0, 1, 1], [], []>} : vector<8x72xbf16>, vector<72x512xbf16>, vector<8x512xf32> -> vector<8x512xf32>
    %c0_3 = arith.constant 0 : index
    %c0_4 = arith.constant 0 : index
    %3 = vector.load %arg3[%c0_3, %c0_4] : memref<8x1xf32, #tpu.memory_space<vmem>>, vector<8x1xf32>
    %4 = vector.broadcast %3 : vector<8x1xf32> to vector<8x512xf32>
    %5 = arith.addf %2, %4 : vector<8x512xf32>
    %cst_5 = arith.constant 0.000000e+00 : f32
    %6 = vector.broadcast %cst_5 : f32 to vector<8x512xf32>
    %7 = arith.maximumf %5, %6 : vector<8x512xf32>
    %8 = arith.truncf %7 : vector<8x512xf32> to vector<8x512xbf16>
    %c0_6 = arith.constant 0 : index
    %c0_7 = arith.constant 0 : index
    %9 = vector.load %arg4[%c0_6, %c0_7] : memref<8x512xbf16, #tpu.memory_space<vmem>>, vector<8x512xbf16>
    tpu.vector_store %arg4[%c0_6, %c0_7], %8 {strides = array<i32>} : memref<8x512xbf16, #tpu.memory_space<vmem>>, vector<8x512xbf16>,
    return
  }
  func.func @transform_0(%arg0: i32) -> (i32, i32) {
    %c0_i32 = arith.constant 0 : i32
    %c0_i32_0 = arith.constant 0 : i32
    %c0_i32_1 = arith.constant 0 : i32
    return %c0_i32, %c0_i32_0 : i32, i32
  }
  func.func @transform_1(%arg0: i32) -> (i32, i32) {
    %c0_i32 = arith.constant 0 : i32
    %c0_i32_0 = arith.constant 0 : i32
    return %c0_i32, %arg0 : i32, i32
  }
  func.func @transform_2(%arg0: i32) -> (i32, i32) {
    %c0_i32 = arith.constant 0 : i32
    %c0_i32_0 = arith.constant 0 : i32
    %c0_i32_1 = arith.constant 0 : i32
    return %c0_i32, %c0_i32_0 : i32, i32
  }
  func.func @transform_3(%arg0: i32) -> (i32, i32) {
    %c0_i32 = arith.constant 0 : i32
    %c0_i32_0 = arith.constant 0 : i32
    return %c0_i32, %arg0 : i32, i32
  }
}

module attributes {stable_mosaic.version = 11 : i64} {
  func.func @conv_mm_kernel(%arg0: i32, %arg1: memref<16x200xbf16, #tpu.memory_space<vmem>>, %arg2: memref<200x128xbf16, #tpu.memory_space<vmem>>, %arg3: memref<16x1xf32, #tpu.memory_space<vmem>>, %arg4: memref<16x128xbf16, #tpu.memory_space<vmem>>) attributes {dimension_semantics = [#tpu.dimension_semantics<parallel>], iteration_bounds = array<i64: 1>, scalar_prefetch = 0 : i64, scratch_operands = 0 : i64, tpu.core_type = #tpu.core_type<tc>, window_params = [{pipeline_mode = #tpu.pipeline_mode<synchronous>, transform_indices = @transform_0, window_bounds = array<i64: 16, 200>}, {transform_indices = @transform_1, window_bounds = array<i64: 200, 128>}, {pipeline_mode = #tpu.pipeline_mode<synchronous>, transform_indices = @transform_2, window_bounds = array<i64: 16, 1>}, {transform_indices = @transform_3, window_bounds = array<i64: 16, 128>}]} {
    %c0 = arith.constant 0 : index
    %c0_0 = arith.constant 0 : index
    %0 = vector.load %arg1[%c0, %c0_0] : memref<16x200xbf16, #tpu.memory_space<vmem>>, vector<16x200xbf16>
    %c0_1 = arith.constant 0 : index
    %c0_2 = arith.constant 0 : index
    %1 = vector.load %arg2[%c0_1, %c0_2] : memref<200x128xbf16, #tpu.memory_space<vmem>>, vector<200x128xbf16>
    %cst = arith.constant dense<0.000000e+00> : vector<16x128xf32>
    %2 = tpu.matmul %0, %1, %cst {dimension_numbers = #tpu.dot_dimension_numbers<[1], [0], [0], [1], [0, 0, 1, 1], [], []>} : vector<16x200xbf16>, vector<200x128xbf16>, vector<16x128xf32> -> vector<16x128xf32>
    %c0_3 = arith.constant 0 : index
    %c0_4 = arith.constant 0 : index
    %3 = vector.load %arg3[%c0_3, %c0_4] : memref<16x1xf32, #tpu.memory_space<vmem>>, vector<16x1xf32>
    %4 = vector.broadcast %3 : vector<16x1xf32> to vector<16x128xf32>
    %5 = arith.addf %2, %4 : vector<16x128xf32>
    %cst_5 = arith.constant 0.000000e+00 : f32
    %6 = vector.broadcast %cst_5 : f32 to vector<16x128xf32>
    %7 = arith.maximumf %5, %6 : vector<16x128xf32>
    %8 = arith.truncf %7 : vector<16x128xf32> to vector<16x128xbf16>
    %c0_6 = arith.constant 0 : index
    %c0_7 = arith.constant 0 : index
    %9 = vector.load %arg4[%c0_6, %c0_7] : memref<16x128xbf16, #tpu.memory_space<vmem>>, vector<16x128xbf16>
    tpu.vector_store %arg4[%c0_6, %c0_7], %8 {strides = array<i32>} : memref<16x128xbf16, #tpu.memory_space<vmem>>, vector<16x128xbf16>,
    return
  }
  func.func @transform_0(%arg0: i32) -> (i32, i32) {
    %c0_i32 = arith.constant 0 : i32
    %c0_i32_0 = arith.constant 0 : i32
    %c0_i32_1 = arith.constant 0 : i32
    return %c0_i32, %c0_i32_0 : i32, i32
  }
  func.func @transform_1(%arg0: i32) -> (i32, i32) {
    %c0_i32 = arith.constant 0 : i32
    %c0_i32_0 = arith.constant 0 : i32
    return %c0_i32, %arg0 : i32, i32
  }
  func.func @transform_2(%arg0: i32) -> (i32, i32) {
    %c0_i32 = arith.constant 0 : i32
    %c0_i32_0 = arith.constant 0 : i32
    %c0_i32_1 = arith.constant 0 : i32
    return %c0_i32, %c0_i32_0 : i32, i32
  }
  func.func @transform_3(%arg0: i32) -> (i32, i32) {
    %c0_i32 = arith.constant 0 : i32
    %c0_i32_0 = arith.constant 0 : i32
    return %c0_i32, %arg0 : i32, i32
  }
}

module attributes {stable_mosaic.version = 11 : i64} {
  func.func @conv_mm_kernel(%arg0: i32, %arg1: memref<16x144xbf16, #tpu.memory_space<vmem>>, %arg2: memref<144x128xbf16, #tpu.memory_space<vmem>>, %arg3: memref<16x1xf32, #tpu.memory_space<vmem>>, %arg4: memref<16x128xbf16, #tpu.memory_space<vmem>>) attributes {dimension_semantics = [#tpu.dimension_semantics<parallel>], iteration_bounds = array<i64: 1>, scalar_prefetch = 0 : i64, scratch_operands = 0 : i64, tpu.core_type = #tpu.core_type<tc>, window_params = [{pipeline_mode = #tpu.pipeline_mode<synchronous>, transform_indices = @transform_0, window_bounds = array<i64: 16, 144>}, {transform_indices = @transform_1, window_bounds = array<i64: 144, 128>}, {pipeline_mode = #tpu.pipeline_mode<synchronous>, transform_indices = @transform_2, window_bounds = array<i64: 16, 1>}, {transform_indices = @transform_3, window_bounds = array<i64: 16, 128>}]} {
    %c0 = arith.constant 0 : index
    %c0_0 = arith.constant 0 : index
    %0 = vector.load %arg1[%c0, %c0_0] : memref<16x144xbf16, #tpu.memory_space<vmem>>, vector<16x144xbf16>
    %c0_1 = arith.constant 0 : index
    %c0_2 = arith.constant 0 : index
    %1 = vector.load %arg2[%c0_1, %c0_2] : memref<144x128xbf16, #tpu.memory_space<vmem>>, vector<144x128xbf16>
    %cst = arith.constant dense<0.000000e+00> : vector<16x128xf32>
    %2 = tpu.matmul %0, %1, %cst {dimension_numbers = #tpu.dot_dimension_numbers<[1], [0], [0], [1], [0, 0, 1, 1], [], []>} : vector<16x144xbf16>, vector<144x128xbf16>, vector<16x128xf32> -> vector<16x128xf32>
    %c0_3 = arith.constant 0 : index
    %c0_4 = arith.constant 0 : index
    %3 = vector.load %arg3[%c0_3, %c0_4] : memref<16x1xf32, #tpu.memory_space<vmem>>, vector<16x1xf32>
    %4 = vector.broadcast %3 : vector<16x1xf32> to vector<16x128xf32>
    %5 = arith.addf %2, %4 : vector<16x128xf32>
    %cst_5 = arith.constant 0.000000e+00 : f32
    %6 = vector.broadcast %cst_5 : f32 to vector<16x128xf32>
    %7 = arith.maximumf %5, %6 : vector<16x128xf32>
    %8 = arith.truncf %7 : vector<16x128xf32> to vector<16x128xbf16>
    %c0_6 = arith.constant 0 : index
    %c0_7 = arith.constant 0 : index
    %9 = vector.load %arg4[%c0_6, %c0_7] : memref<16x128xbf16, #tpu.memory_space<vmem>>, vector<16x128xbf16>
    tpu.vector_store %arg4[%c0_6, %c0_7], %8 {strides = array<i32>} : memref<16x128xbf16, #tpu.memory_space<vmem>>, vector<16x128xbf16>,
    return
  }
  func.func @transform_0(%arg0: i32) -> (i32, i32) {
    %c0_i32 = arith.constant 0 : i32
    %c0_i32_0 = arith.constant 0 : i32
    %c0_i32_1 = arith.constant 0 : i32
    return %c0_i32, %c0_i32_0 : i32, i32
  }
  func.func @transform_1(%arg0: i32) -> (i32, i32) {
    %c0_i32 = arith.constant 0 : i32
    %c0_i32_0 = arith.constant 0 : i32
    return %c0_i32, %arg0 : i32, i32
  }
  func.func @transform_2(%arg0: i32) -> (i32, i32) {
    %c0_i32 = arith.constant 0 : i32
    %c0_i32_0 = arith.constant 0 : i32
    %c0_i32_1 = arith.constant 0 : i32
    return %c0_i32, %c0_i32_0 : i32, i32
  }
  func.func @transform_3(%arg0: i32) -> (i32, i32) {
    %c0_i32 = arith.constant 0 : i32
    %c0_i32_0 = arith.constant 0 : i32
    return %c0_i32, %arg0 : i32, i32
  }
}

module attributes {stable_mosaic.version = 11 : i64} {
  func.func @conv_mm_kernel(%arg0: i32, %arg1: memref<32x400xbf16, #tpu.memory_space<vmem>>, %arg2: memref<400x128xbf16, #tpu.memory_space<vmem>>, %arg3: memref<32x1xf32, #tpu.memory_space<vmem>>, %arg4: memref<32x128xbf16, #tpu.memory_space<vmem>>) attributes {dimension_semantics = [#tpu.dimension_semantics<parallel>], iteration_bounds = array<i64: 1>, scalar_prefetch = 0 : i64, scratch_operands = 0 : i64, tpu.core_type = #tpu.core_type<tc>, window_params = [{pipeline_mode = #tpu.pipeline_mode<synchronous>, transform_indices = @transform_0, window_bounds = array<i64: 32, 400>}, {transform_indices = @transform_1, window_bounds = array<i64: 400, 128>}, {pipeline_mode = #tpu.pipeline_mode<synchronous>, transform_indices = @transform_2, window_bounds = array<i64: 32, 1>}, {transform_indices = @transform_3, window_bounds = array<i64: 32, 128>}]} {
    %c0 = arith.constant 0 : index
    %c0_0 = arith.constant 0 : index
    %0 = vector.load %arg1[%c0, %c0_0] : memref<32x400xbf16, #tpu.memory_space<vmem>>, vector<32x400xbf16>
    %c0_1 = arith.constant 0 : index
    %c0_2 = arith.constant 0 : index
    %1 = vector.load %arg2[%c0_1, %c0_2] : memref<400x128xbf16, #tpu.memory_space<vmem>>, vector<400x128xbf16>
    %cst = arith.constant dense<0.000000e+00> : vector<32x128xf32>
    %2 = tpu.matmul %0, %1, %cst {dimension_numbers = #tpu.dot_dimension_numbers<[1], [0], [0], [1], [0, 0, 1, 1], [], []>} : vector<32x400xbf16>, vector<400x128xbf16>, vector<32x128xf32> -> vector<32x128xf32>
    %c0_3 = arith.constant 0 : index
    %c0_4 = arith.constant 0 : index
    %3 = vector.load %arg3[%c0_3, %c0_4] : memref<32x1xf32, #tpu.memory_space<vmem>>, vector<32x1xf32>
    %4 = vector.broadcast %3 : vector<32x1xf32> to vector<32x128xf32>
    %5 = arith.addf %2, %4 : vector<32x128xf32>
    %cst_5 = arith.constant 0.000000e+00 : f32
    %6 = vector.broadcast %cst_5 : f32 to vector<32x128xf32>
    %7 = arith.maximumf %5, %6 : vector<32x128xf32>
    %8 = arith.truncf %7 : vector<32x128xf32> to vector<32x128xbf16>
    %c0_6 = arith.constant 0 : index
    %c0_7 = arith.constant 0 : index
    %9 = vector.load %arg4[%c0_6, %c0_7] : memref<32x128xbf16, #tpu.memory_space<vmem>>, vector<32x128xbf16>
    tpu.vector_store %arg4[%c0_6, %c0_7], %8 {strides = array<i32>} : memref<32x128xbf16, #tpu.memory_space<vmem>>, vector<32x128xbf16>,
    return
  }
  func.func @transform_0(%arg0: i32) -> (i32, i32) {
    %c0_i32 = arith.constant 0 : i32
    %c0_i32_0 = arith.constant 0 : i32
    %c0_i32_1 = arith.constant 0 : i32
    return %c0_i32, %c0_i32_0 : i32, i32
  }
  func.func @transform_1(%arg0: i32) -> (i32, i32) {
    %c0_i32 = arith.constant 0 : i32
    %c0_i32_0 = arith.constant 0 : i32
    return %c0_i32, %arg0 : i32, i32
  }
  func.func @transform_2(%arg0: i32) -> (i32, i32) {
    %c0_i32 = arith.constant 0 : i32
    %c0_i32_0 = arith.constant 0 : i32
    %c0_i32_1 = arith.constant 0 : i32
    return %c0_i32, %c0_i32_0 : i32, i32
  }
  func.func @transform_3(%arg0: i32) -> (i32, i32) {
    %c0_i32 = arith.constant 0 : i32
    %c0_i32_0 = arith.constant 0 : i32
    return %c0_i32, %arg0 : i32, i32
  }
}

module attributes {stable_mosaic.version = 11 : i64} {
  func.func @conv_mm_kernel(%arg0: i32, %arg1: memref<32x288xbf16, #tpu.memory_space<vmem>>, %arg2: memref<288x128xbf16, #tpu.memory_space<vmem>>, %arg3: memref<32x1xf32, #tpu.memory_space<vmem>>, %arg4: memref<32x128xbf16, #tpu.memory_space<vmem>>) attributes {dimension_semantics = [#tpu.dimension_semantics<parallel>], iteration_bounds = array<i64: 1>, scalar_prefetch = 0 : i64, scratch_operands = 0 : i64, tpu.core_type = #tpu.core_type<tc>, window_params = [{pipeline_mode = #tpu.pipeline_mode<synchronous>, transform_indices = @transform_0, window_bounds = array<i64: 32, 288>}, {transform_indices = @transform_1, window_bounds = array<i64: 288, 128>}, {pipeline_mode = #tpu.pipeline_mode<synchronous>, transform_indices = @transform_2, window_bounds = array<i64: 32, 1>}, {transform_indices = @transform_3, window_bounds = array<i64: 32, 128>}]} {
    %c0 = arith.constant 0 : index
    %c0_0 = arith.constant 0 : index
    %0 = vector.load %arg1[%c0, %c0_0] : memref<32x288xbf16, #tpu.memory_space<vmem>>, vector<32x288xbf16>
    %c0_1 = arith.constant 0 : index
    %c0_2 = arith.constant 0 : index
    %1 = vector.load %arg2[%c0_1, %c0_2] : memref<288x128xbf16, #tpu.memory_space<vmem>>, vector<288x128xbf16>
    %cst = arith.constant dense<0.000000e+00> : vector<32x128xf32>
    %2 = tpu.matmul %0, %1, %cst {dimension_numbers = #tpu.dot_dimension_numbers<[1], [0], [0], [1], [0, 0, 1, 1], [], []>} : vector<32x288xbf16>, vector<288x128xbf16>, vector<32x128xf32> -> vector<32x128xf32>
    %c0_3 = arith.constant 0 : index
    %c0_4 = arith.constant 0 : index
    %3 = vector.load %arg3[%c0_3, %c0_4] : memref<32x1xf32, #tpu.memory_space<vmem>>, vector<32x1xf32>
    %4 = vector.broadcast %3 : vector<32x1xf32> to vector<32x128xf32>
    %5 = arith.addf %2, %4 : vector<32x128xf32>
    %cst_5 = arith.constant 0.000000e+00 : f32
    %6 = vector.broadcast %cst_5 : f32 to vector<32x128xf32>
    %7 = arith.maximumf %5, %6 : vector<32x128xf32>
    %8 = arith.truncf %7 : vector<32x128xf32> to vector<32x128xbf16>
    %c0_6 = arith.constant 0 : index
    %c0_7 = arith.constant 0 : index
    %9 = vector.load %arg4[%c0_6, %c0_7] : memref<32x128xbf16, #tpu.memory_space<vmem>>, vector<32x128xbf16>
    tpu.vector_store %arg4[%c0_6, %c0_7], %8 {strides = array<i32>} : memref<32x128xbf16, #tpu.memory_space<vmem>>, vector<32x128xbf16>,
    return
  }
  func.func @transform_0(%arg0: i32) -> (i32, i32) {
    %c0_i32 = arith.constant 0 : i32
    %c0_i32_0 = arith.constant 0 : i32
    %c0_i32_1 = arith.constant 0 : i32
    return %c0_i32, %c0_i32_0 : i32, i32
  }
  func.func @transform_1(%arg0: i32) -> (i32, i32) {
    %c0_i32 = arith.constant 0 : i32
    %c0_i32_0 = arith.constant 0 : i32
    return %c0_i32, %arg0 : i32, i32
  }
  func.func @transform_2(%arg0: i32) -> (i32, i32) {
    %c0_i32 = arith.constant 0 : i32
    %c0_i32_0 = arith.constant 0 : i32
    %c0_i32_1 = arith.constant 0 : i32
    return %c0_i32, %c0_i32_0 : i32, i32
  }
  func.func @transform_3(%arg0: i32) -> (i32, i32) {
    %c0_i32 = arith.constant 0 : i32
    %c0_i32_0 = arith.constant 0 : i32
    return %c0_i32, %arg0 : i32, i32
  }
}

module attributes {stable_mosaic.version = 11 : i64} {
  func.func @conv_mm_kernel(%arg0: i32, %arg1: memref<32x288xbf16, #tpu.memory_space<vmem>>, %arg2: memref<288x128xbf16, #tpu.memory_space<vmem>>, %arg3: memref<32x1xf32, #tpu.memory_space<vmem>>, %arg4: memref<32x128xf32, #tpu.memory_space<vmem>>) attributes {dimension_semantics = [#tpu.dimension_semantics<parallel>], iteration_bounds = array<i64: 1>, scalar_prefetch = 0 : i64, scratch_operands = 0 : i64, tpu.core_type = #tpu.core_type<tc>, window_params = [{pipeline_mode = #tpu.pipeline_mode<synchronous>, transform_indices = @transform_0, window_bounds = array<i64: 32, 288>}, {transform_indices = @transform_1, window_bounds = array<i64: 288, 128>}, {pipeline_mode = #tpu.pipeline_mode<synchronous>, transform_indices = @transform_2, window_bounds = array<i64: 32, 1>}, {transform_indices = @transform_3, window_bounds = array<i64: 32, 128>}]} {
    %c0 = arith.constant 0 : index
    %c0_0 = arith.constant 0 : index
    %0 = vector.load %arg1[%c0, %c0_0] : memref<32x288xbf16, #tpu.memory_space<vmem>>, vector<32x288xbf16>
    %c0_1 = arith.constant 0 : index
    %c0_2 = arith.constant 0 : index
    %1 = vector.load %arg2[%c0_1, %c0_2] : memref<288x128xbf16, #tpu.memory_space<vmem>>, vector<288x128xbf16>
    %cst = arith.constant dense<0.000000e+00> : vector<32x128xf32>
    %2 = tpu.matmul %0, %1, %cst {dimension_numbers = #tpu.dot_dimension_numbers<[1], [0], [0], [1], [0, 0, 1, 1], [], []>} : vector<32x288xbf16>, vector<288x128xbf16>, vector<32x128xf32> -> vector<32x128xf32>
    %c0_3 = arith.constant 0 : index
    %c0_4 = arith.constant 0 : index
    %3 = vector.load %arg3[%c0_3, %c0_4] : memref<32x1xf32, #tpu.memory_space<vmem>>, vector<32x1xf32>
    %4 = vector.broadcast %3 : vector<32x1xf32> to vector<32x128xf32>
    %5 = arith.addf %2, %4 : vector<32x128xf32>
    %c0_5 = arith.constant 0 : index
    %c0_6 = arith.constant 0 : index
    %6 = vector.load %arg4[%c0_5, %c0_6] : memref<32x128xf32, #tpu.memory_space<vmem>>, vector<32x128xf32>
    tpu.vector_store %arg4[%c0_5, %c0_6], %5 {strides = array<i32>} : memref<32x128xf32, #tpu.memory_space<vmem>>, vector<32x128xf32>,
    return
  }
  func.func @transform_0(%arg0: i32) -> (i32, i32) {
    %c0_i32 = arith.constant 0 : i32
    %c0_i32_0 = arith.constant 0 : i32
    %c0_i32_1 = arith.constant 0 : i32
    return %c0_i32, %c0_i32_0 : i32, i32
  }
  func.func @transform_1(%arg0: i32) -> (i32, i32) {
    %c0_i32 = arith.constant 0 : i32
    %c0_i32_0 = arith.constant 0 : i32
    return %c0_i32, %arg0 : i32, i32
  }
  func.func @transform_2(%arg0: i32) -> (i32, i32) {
    %c0_i32 = arith.constant 0 : i32
    %c0_i32_0 = arith.constant 0 : i32
    %c0_i32_1 = arith.constant 0 : i32
    return %c0_i32, %c0_i32_0 : i32, i32
  }
  func.func @transform_3(%arg0: i32) -> (i32, i32) {
    %c0_i32 = arith.constant 0 : i32
    %c0_i32_0 = arith.constant 0 : i32
    return %c0_i32, %arg0 : i32, i32
  }
}

</mosaic_0001>

<llo_original>
// kernel: feature_net_forward.9
$region0: #{feature_net_forward.9}
  #allocation0 [shape = 'u32[]', space=smem, size = 0x4, offset = 0x4, fixed_abs, tag = 'smem constant byte address 0x4 - core index']
  #allocation1 [shape = 'u32[144,128]{1,0:T(1,128)}', space=vmem, size = 0x12000, scoped, tag = 'internal scratch']
  %s0 = inlined_call_operand.vmem [shape: bf16[8,27], index: 0, kind: input, shape index: {}]
  %s1 = inlined_call_operand.vmem [shape: bf16[27,512], index: 1, kind: input, shape index: {}]
  %s2 = inlined_call_operand.vmem [shape: f32[8,1], index: 2, kind: input, shape index: {}]
  %s3 = inlined_call_operand.vmem [shape: bf16[8,512], index: 3, kind: output, shape index: {}]
  %s4 = sld [smem:[#allocation0]]
  $region22: #{feature_net_forward.9} parent=0
    _
  %s6 = ssub.s32 1, %s4
  %s7 = scalar_select 0, %s6, %s4
  // Predicated region
  $region2: #{feature_net_forward.9} parent=0 // pred_check
    _
  $region3: #{feature_net_forward.9} parent=0 // pred_check_branch
    %9 = sbr.rel (0) target = $region5
  $region4: #{feature_net_forward.9} parent=0 // pred_region
    _
  $region5: #{feature_net_forward.9} parent=0 // pred_fallthru
    _
  // Predicated region
  $region6: #{feature_net_forward.9} parent=0 // pred_check
    _
  $region7: #{feature_net_forward.9} parent=0 // pred_check_branch
    %11 = sbr.rel (0) target = $region9
  $region8: #{feature_net_forward.9} parent=0 // pred_region
    _
  $region9: #{feature_net_forward.9} parent=0 // pred_fallthru
    _
  // Predicated region
  $region10: #{feature_net_forward.9} parent=0 // pred_check
    _
  $region11: #{feature_net_forward.9} parent=0 // pred_check_branch
    %13 = sbr.rel (0) target = $region13
  $region12: #{feature_net_forward.9} parent=0 // pred_region
    _
  $region13: #{feature_net_forward.9} parent=0 // pred_fallthru
    _
  %v15 = vld [vmem:[%s0] sm:$0xf]
  %v16 = vld [vmem:[%s1] sm:$0xff]
  %v17 = vld [vmem:[%s1 + $0x8] sm:$0xff]
  %v18 = vld [vmem:[%s1 + $0x10] sm:$0xff]
  %v19 = vld [vmem:[%s1 + $0x18] sm:$0xff]
  %v20 = vld [vmem:[%s1 + $0x20] sm:$0xff]
  %v21 = vld [vmem:[%s1 + $0x28] sm:$0xff]
  %v22 = vld [vmem:[%s1 + $0x30] sm:$0x33]
  %v23 = vld [vmem:[%s1 + $0x38] sm:$0x33]
  %v24 = vld [vmem:[%s2] sm:$0xff]
  %26 = vset.pattern.permute.xlu0 0
  %27 = vperm.xlu0 %26, %v24
  %v28 = vpop.permute.xlu0 %27
  %v38 = vunpack.c.l.b16 %v16
  %v39 = vunpack.c.h.b16 %v16
  %v40 = vunpack.c.l.b16 %v17
  %v41 = vunpack.c.h.b16 %v17
  %v42 = vunpack.c.l.b16 %v18
  %v43 = vunpack.c.h.b16 %v18
  %v44 = vunpack.c.l.b16 %v19
  %v45 = vunpack.c.h.b16 %v19
  %v46 = vunpack.c.l.b16 %v20
  %v47 = vunpack.c.h.b16 %v20
  %v48 = vunpack.c.l.b16 %v21
  %v49 = vunpack.c.h.b16 %v21
  %v50 = vunpack.c.l.b16 %v22
  %v51 = vunpack.c.h.b16 %v22
  %v52 = vunpack.c.l.b16 %v23
  %v53 = vunpack.c.h.b16 %v23
  %v54 = vpack.c.b16 %v42, %v38
  %v55 = vpack.c.b16 %v43, %v39
  %v56 = vpack.c.b16 %v44, %v40
  %v57 = vpack.c.b16 %v45, %v41
  %v58 = vpack.c.b16 %v50, %v46
  %v59 = vpack.c.b16 %v51, %v47
  %v60 = vpack.c.b16 %v52, %v48
  %v61 = vpack.c.b16 %v53, %v49
  %vm66 = vcmask 220160
  %v68 = vsel %vm66, %v15, 0
  %vm70 = vcmask 1044480
  %vm71 = vcmask 1045504
  %v72 = vsel %vm70, 4294967295, 65535
  %v73 = vsel %vm71, %v72, 0
  %v75 = vand.u32 %v58, %v73
  %v78 = vand.u32 %v59, %v73
  %v81 = vand.u32 %v60, %v73
  %v84 = vand.u32 %v61, %v73
  %86 = vmatprep.subr.bf16.mxu0 %v55
  %87 = vmatpush1.bf16.msra.mxu0 %v54
  %88 = vmatprep.subr.bf16.mxu0 %v78
  %89 = vmatpush1.bf16.msra.mxu0 %v75
  %90 = vmatprep.subr.bf16.mxu0 0
  %91 = vmatpush1.bf16.msra.mxu0 0
  %92 = vmatprep.subr.bf16.mxu0 0
  %93 = vmatpush1.bf16.msra.mxu0 0
  %94 = vmatprep.subr.bf16.mxu0 0
  %95 = vmatpush1.bf16.msra.mxu0 0
  %96 = vmatprep.subr.bf16.mxu0 0
  %97 = vmatpush1.bf16.msra.mxu0 0
  %98 = vmatprep.subr.bf16.mxu0 0
  %99 = vmatpush1.bf16.msra.mxu0 0
  %100 = vmatprep.subr.bf16.mxu0 0
  %101 = vmatpush1.bf16.msra.mxu0 0
  %102 = vmatprep.subr.bf16.mxu0 0
  %103 = vmatpush1.bf16.msra.mxu0 0
  %104 = vmatprep.subr.bf16.mxu0 0
  %105 = vmatpush1.bf16.msra.mxu0 0
  %106 = vmatprep.subr.bf16.mxu0 0
  %107 = vmatpush1.bf16.msra.mxu0 0
  %108 = vmatprep.subr.bf16.mxu0 0
  %109 = vmatpush1.bf16.msra.mxu0 0
  %110 = vmatprep.subr.bf16.mxu0 0
  %111 = vmatpush1.bf16.msra.mxu0 0
  %112 = vmatprep.subr.bf16.mxu0 0
  %113 = vmatpush1.bf16.msra.mxu0 0
  %114 = vmatprep.subr.bf16.mxu0 0
  %115 = vmatpush1.bf16.msra.mxu0 0
  %116 = vmatprep.subr.bf16.mxu0 0
  %117 = vmatpush1.bf16.msra.mxu0 0
  %118 = vmatprep.mubr.bf16.mxu0 0
  %119 = vmatmul.mubr.bf16.gmra.mrb[0].mxu0 %v68
  %v120 = vpop.f32.mrb[0].mxu0
  %v121 = vadd.f32 %v28, %v120
  %v122 = vpop.f32.mrb[0].mxu0
  %v123 = vadd.f32 %v28, %v122
  %v124 = vpop.f32.mrb[0].mxu0
  %v125 = vpop.f32.mrb[0].mxu0
  %126 = vdwg.mxu0
  %127 = vmatprep.subr.bf16.mxu0 %v57
  %128 = vmatpush1.bf16.msra.mxu0 %v56
  %129 = vmatprep.subr.bf16.mxu0 %v84
  %130 = vmatpush1.bf16.msra.mxu0 %v81
  %131 = vmatprep.subr.bf16.mxu0 0
  %132 = vmatpush1.bf16.msra.mxu0 0
  %133 = vmatprep.subr.bf16.mxu0 0
  %134 = vmatpush1.bf16.msra.mxu0 0
  %135 = vmatprep.subr.bf16.mxu0 0
  %136 = vmatpush1.bf16.msra.mxu0 0
  %137 = vmatprep.subr.bf16.mxu0 0
  %138 = vmatpush1.bf16.msra.mxu0 0
  %139 = vmatprep.subr.bf16.mxu0 0
  %140 = vmatpush1.bf16.msra.mxu0 0
  %141 = vmatprep.subr.bf16.mxu0 0
  %142 = vmatpush1.bf16.msra.mxu0 0
  %143 = vmatprep.subr.bf16.mxu0 0
  %144 = vmatpush1.bf16.msra.mxu0 0
  %145 = vmatprep.subr.bf16.mxu0 0
  %146 = vmatpush1.bf16.msra.mxu0 0
  %147 = vmatprep.subr.bf16.mxu0 0
  %148 = vmatpush1.bf16.msra.mxu0 0
  %149 = vmatprep.subr.bf16.mxu0 0
  %150 = vmatpush1.bf16.msra.mxu0 0
  %151 = vmatprep.subr.bf16.mxu0 0
  %152 = vmatpush1.bf16.msra.mxu0 0
  %153 = vmatprep.subr.bf16.mxu0 0
  %154 = vmatpush1.bf16.msra.mxu0 0
  %155 = vmatprep.subr.bf16.mxu0 0
  %156 = vmatpush1.bf16.msra.mxu0 0
  %157 = vmatprep.subr.bf16.mxu0 0
  %158 = vmatpush1.bf16.msra.mxu0 0
  %159 = vmatprep.mubr.bf16.mxu0 0
  %160 = vmatmul.mubr.bf16.gmra.mrb[0].mxu0 %v68
  %v161 = vpop.f32.mrb[0].mxu0
  %v162 = vadd.f32 %v28, %v161
  %v163 = vpop.f32.mrb[0].mxu0
  %v164 = vadd.f32 %v28, %v163
  %v165 = vpop.f32.mrb[0].mxu0
  %v166 = vpop.f32.mrb[0].mxu0
  %167 = vdwg.mxu0
  %v168 = vmax.f32 %v121, 0.0
  %v169 = vmax.f32 %v123, 0.0
  %v170 = vmax.f32 %v162, 0.0
  %v171 = vmax.f32 %v164, 0.0
  %v172 = vpack.c.bf16 %v168, %v168
  %v173 = vpack.c.bf16 %v169, %v169
  %v174 = vpack.c.bf16 %v170, %v170
  %v175 = vpack.c.bf16 %v171, %v171
  %v180 = vunpack.c.l.b16 %v172
  %v181 = vunpack.c.l.b16 %v173
  %v182 = vunpack.c.l.b16 %v174
  %v183 = vunpack.c.l.b16 %v175
  %v184 = vpack.c.b16 %v181, %v180
  %v185 = vpack.c.b16 %v183, %v182
  %188 = vst [vmem:[%s3] sm:$0xff] %v184
  %189 = vst [vmem:[%s3 + $0x8] sm:$0xff] %v185
  // Predicated region
  $region14: #{feature_net_forward.9} parent=0 // pred_check
    _
  $region15: #{feature_net_forward.9} parent=0 // pred_check_branch
    %191 = sbr.rel (0) target = $region17
  $region16: #{feature_net_forward.9} parent=0 // pred_region
    _
  $region17: #{feature_net_forward.9} parent=0 // pred_fallthru
    _
  // Predicated region
  $region18: #{feature_net_forward.9} parent=0 // pred_check
    _
  $region19: #{feature_net_forward.9} parent=0 // pred_check_branch
    %193 = sbr.rel (0) target = $region21
  $region20: #{feature_net_forward.9} parent=0 // pred_region
    _
  $region21: #{feature_net_forward.9} parent=0 // pred_fallthru
    _

// kernel: feature_net_forward.10
$region0: #{feature_net_forward.10}
  #allocation0 [shape = 'u32[]', space=smem, size = 0x4, offset = 0x4, fixed_abs, tag = 'smem constant byte address 0x4 - core index']
  #allocation1 [shape = 'u32[144,128]{1,0:T(1,128)}', space=vmem, size = 0x12000, scoped, tag = 'internal scratch']
  %s0 = inlined_call_operand.vmem [shape: bf16[8,72], index: 0, kind: input, shape index: {}]
  %s1 = inlined_call_operand.vmem [shape: bf16[72,512], index: 1, kind: input, shape index: {}]
  %s2 = inlined_call_operand.vmem [shape: f32[8,1], index: 2, kind: input, shape index: {}]
  %s3 = inlined_call_operand.vmem [shape: bf16[8,512], index: 3, kind: output, shape index: {}]
  %s4 = sld [smem:[#allocation0]]
  $region22: #{feature_net_forward.10} parent=0
    _
  %s6 = ssub.s32 1, %s4
  %s7 = scalar_select 0, %s6, %s4
  // Predicated region
  $region2: #{feature_net_forward.10} parent=0 // pred_check
    _
  $region3: #{feature_net_forward.10} parent=0 // pred_check_branch
    %9 = sbr.rel (0) target = $region5
  $region4: #{feature_net_forward.10} parent=0 // pred_region
    _
  $region5: #{feature_net_forward.10} parent=0 // pred_fallthru
    _
  // Predicated region
  $region6: #{feature_net_forward.10} parent=0 // pred_check
    _
  $region7: #{feature_net_forward.10} parent=0 // pred_check_branch
    %11 = sbr.rel (0) target = $region9
  $region8: #{feature_net_forward.10} parent=0 // pred_region
    _
  $region9: #{feature_net_forward.10} parent=0 // pred_fallthru
    _
  // Predicated region
  $region10: #{feature_net_forward.10} parent=0 // pred_check
    _
  $region11: #{feature_net_forward.10} parent=0 // pred_check_branch
    %13 = sbr.rel (0) target = $region13
  $region12: #{feature_net_forward.10} parent=0 // pred_region
    _
  $region13: #{feature_net_forward.10} parent=0 // pred_fallthru
    _
  %v15 = vld [vmem:[%s0] sm:$0xf]
  %v16 = vld [vmem:[%s1] sm:$0xff]
  %v17 = vld [vmem:[%s1 + $0x8] sm:$0xff]
  %v18 = vld [vmem:[%s1 + $0x10] sm:$0xff]
  %v19 = vld [vmem:[%s1 + $0x18] sm:$0xff]
  %v20 = vld [vmem:[%s1 + $0x20] sm:$0xff]
  %v21 = vld [vmem:[%s1 + $0x28] sm:$0xff]
  %v22 = vld [vmem:[%s1 + $0x30] sm:$0xff]
  %v23 = vld [vmem:[%s1 + $0x38] sm:$0xff]
  %v24 = vld [vmem:[%s1 + $0x40] sm:$0xff]
  %v25 = vld [vmem:[%s1 + $0x48] sm:$0xff]
  %v26 = vld [vmem:[%s1 + $0x50] sm:$0xff]
  %v27 = vld [vmem:[%s1 + $0x58] sm:$0xff]
  %v28 = vld [vmem:[%s1 + $0x60] sm:$0xff]
  %v29 = vld [vmem:[%s1 + $0x68] sm:$0xff]
  %v30 = vld [vmem:[%s1 + $0x70] sm:$0xff]
  %v31 = vld [vmem:[%s1 + $0x78] sm:$0xff]
  %v32 = vld [vmem:[%s1 + $0x80] sm:$0xff]
  %v33 = vld [vmem:[%s1 + $0x88] sm:$0xff]
  %v34 = vld [vmem:[%s2] sm:$0xff]
  %36 = vset.pattern.permute.xlu0 0
  %37 = vperm.xlu0 %36, %v34
  %v38 = vpop.permute.xlu0 %37
  %v58 = vunpack.c.l.b16 %v16
  %v59 = vunpack.c.h.b16 %v16
  %v60 = vunpack.c.l.b16 %v17
  %v61 = vunpack.c.h.b16 %v17
  %v62 = vunpack.c.l.b16 %v18
  %v63 = vunpack.c.h.b16 %v18
  %v64 = vunpack.c.l.b16 %v19
  %v65 = vunpack.c.h.b16 %v19
  %v66 = vunpack.c.l.b16 %v20
  %v67 = vunpack.c.h.b16 %v20
  %v68 = vunpack.c.l.b16 %v21
  %v69 = vunpack.c.h.b16 %v21
  %v70 = vunpack.c.l.b16 %v22
  %v71 = vunpack.c.h.b16 %v22
  %v72 = vunpack.c.l.b16 %v23
  %v73 = vunpack.c.h.b16 %v23
  %v74 = vunpack.c.l.b16 %v24
  %v75 = vunpack.c.h.b16 %v24
  %v76 = vunpack.c.l.b16 %v25
  %v77 = vunpack.c.h.b16 %v25
  %v78 = vunpack.c.l.b16 %v26
  %v79 = vunpack.c.h.b16 %v26
  %v80 = vunpack.c.l.b16 %v27
  %v81 = vunpack.c.h.b16 %v27
  %v82 = vunpack.c.l.b16 %v28
  %v83 = vunpack.c.h.b16 %v28
  %v84 = vunpack.c.l.b16 %v29
  %v85 = vunpack.c.h.b16 %v29
  %v86 = vunpack.c.l.b16 %v30
  %v87 = vunpack.c.h.b16 %v30
  %v88 = vunpack.c.l.b16 %v31
  %v89 = vunpack.c.h.b16 %v31
  %v90 = vunpack.c.l.b16 %v32
  %v91 = vunpack.c.h.b16 %v32
  %v92 = vunpack.c.l.b16 %v33
  %v93 = vunpack.c.h.b16 %v33
  %v94 = vpack.c.b16 %v62, %v58
  %v95 = vpack.c.b16 %v63, %v59
  %v96 = vpack.c.b16 %v64, %v60
  %v97 = vpack.c.b16 %v65, %v61
  %v98 = vpack.c.b16 %v70, %v66
  %v99 = vpack.c.b16 %v71, %v67
  %v100 = vpack.c.b16 %v72, %v68
  %v101 = vpack.c.b16 %v73, %v69
  %v102 = vpack.c.b16 %v78, %v74
  %v103 = vpack.c.b16 %v79, %v75
  %v104 = vpack.c.b16 %v80, %v76
  %v105 = vpack.c.b16 %v81, %v77
  %v106 = vpack.c.b16 %v86, %v82
  %v107 = vpack.c.b16 %v87, %v83
  %v108 = vpack.c.b16 %v88, %v84
  %v109 = vpack.c.b16 %v89, %v85
  %v110 = vpack.c.b16 %v90, %v90
  %v111 = vpack.c.b16 %v91, %v91
  %v112 = vpack.c.b16 %v92, %v92
  %v113 = vpack.c.b16 %v93, %v93
  %vm130 = vcmask 588800
  %v132 = vsel %vm130, %v15, 0
  %vm134 = vcmask 1043456
  %v136 = vsel %vm134, %v110, 0
  %v139 = vsel %vm134, %v111, 0
  %v142 = vsel %vm134, %v112, 0
  %v145 = vsel %vm134, %v113, 0
  %147 = vmatprep.subr.bf16.mxu0 %v95
  %148 = vmatpush1.bf16.msra.mxu0 %v94
  %149 = vmatprep.subr.bf16.mxu0 %v99
  %150 = vmatpush1.bf16.msra.mxu0 %v98
  %151 = vmatprep.subr.bf16.mxu0 %v103
  %152 = vmatpush1.bf16.msra.mxu0 %v102
  %153 = vmatprep.subr.bf16.mxu0 %v107
  %154 = vmatpush1.bf16.msra.mxu0 %v106
  %155 = vmatprep.subr.bf16.mxu0 %v139
  %156 = vmatpush1.bf16.msra.mxu0 %v136
  %157 = vmatprep.subr.bf16.mxu0 0
  %158 = vmatpush1.bf16.msra.mxu0 0
  %159 = vmatprep.subr.bf16.mxu0 0
  %160 = vmatpush1.bf16.msra.mxu0 0
  %161 = vmatprep.subr.bf16.mxu0 0
  %162 = vmatpush1.bf16.msra.mxu0 0
  %163 = vmatprep.subr.bf16.mxu0 0
  %164 = vmatpush1.bf16.msra.mxu0 0
  %165 = vmatprep.subr.bf16.mxu0 0
  %166 = vmatpush1.bf16.msra.mxu0 0
  %167 = vmatprep.subr.bf16.mxu0 0
  %168 = vmatpush1.bf16.msra.mxu0 0
  %169 = vmatprep.subr.bf16.mxu0 0
  %170 = vmatpush1.bf16.msra.mxu0 0
  %171 = vmatprep.subr.bf16.mxu0 0
  %172 = vmatpush1.bf16.msra.mxu0 0
  %173 = vmatprep.subr.bf16.mxu0 0
  %174 = vmatpush1.bf16.msra.mxu0 0
  %175 = vmatprep.subr.bf16.mxu0 0
  %176 = vmatpush1.bf16.msra.mxu0 0
  %177 = vmatprep.subr.bf16.mxu0 0
  %178 = vmatpush1.bf16.msra.mxu0 0
  %179 = vmatprep.mubr.bf16.mxu0 0
  %180 = vmatmul.mubr.bf16.gmra.mrb[0].mxu0 %v132
  %v181 = vpop.f32.mrb[0].mxu0
  %v182 = vadd.f32 %v38, %v181
  %v183 = vpop.f32.mrb[0].mxu0
  %v184 = vadd.f32 %v38, %v183
  %v185 = vpop.f32.mrb[0].mxu0
  %v186 = vpop.f32.mrb[0].mxu0
  %187 = vdwg.mxu0
  %188 = vmatprep.subr.bf16.mxu0 %v97
  %189 = vmatpush1.bf16.msra.mxu0 %v96
  %190 = vmatprep.subr.bf16.mxu0 %v101
  %191 = vmatpush1.bf16.msra.mxu0 %v100
  %192 = vmatprep.subr.bf16.mxu0 %v105
  %193 = vmatpush1.bf16.msra.mxu0 %v104
  %194 = vmatprep.subr.bf16.mxu0 %v109
  %195 = vmatpush1.bf16.msra.mxu0 %v108
  %196 = vmatprep.subr.bf16.mxu0 %v145
  %197 = vmatpush1.bf16.msra.mxu0 %v142
  %198 = vmatprep.subr.bf16.mxu0 0
  %199 = vmatpush1.bf16.msra.mxu0 0
  %200 = vmatprep.subr.bf16.mxu0 0
  %201 = vmatpush1.bf16.msra.mxu0 0
  %202 = vmatprep.subr.bf16.mxu0 0
  %203 = vmatpush1.bf16.msra.mxu0 0
  %204 = vmatprep.subr.bf16.mxu0 0
  %205 = vmatpush1.bf16.msra.mxu0 0
  %206 = vmatprep.subr.bf16.mxu0 0
  %207 = vmatpush1.bf16.msra.mxu0 0
  %208 = vmatprep.subr.bf16.mxu0 0
  %209 = vmatpush1.bf16.msra.mxu0 0
  %210 = vmatprep.subr.bf16.mxu0 0
  %211 = vmatpush1.bf16.msra.mxu0 0
  %212 = vmatprep.subr.bf16.mxu0 0
  %213 = vmatpush1.bf16.msra.mxu0 0
  %214 = vmatprep.subr.bf16.mxu0 0
  %215 = vmatpush1.bf16.msra.mxu0 0
  %216 = vmatprep.subr.bf16.mxu0 0
  %217 = vmatpush1.bf16.msra.mxu0 0
  %218 = vmatprep.subr.bf16.mxu0 0
  %219 = vmatpush1.bf16.msra.mxu0 0
  %220 = vmatprep.mubr.bf16.mxu0 0
  %221 = vmatmul.mubr.bf16.gmra.mrb[0].mxu0 %v132
  %v222 = vpop.f32.mrb[0].mxu0
  %v223 = vadd.f32 %v38, %v222
  %v224 = vpop.f32.mrb[0].mxu0
  %v225 = vadd.f32 %v38, %v224
  %v226 = vpop.f32.mrb[0].mxu0
  %v227 = vpop.f32.mrb[0].mxu0
  %228 = vdwg.mxu0
  %v229 = vmax.f32 %v182, 0.0
  %v230 = vmax.f32 %v184, 0.0
  %v231 = vmax.f32 %v223, 0.0
  %v232 = vmax.f32 %v225, 0.0
  %v233 = vpack.c.bf16 %v229, %v229
  %v234 = vpack.c.bf16 %v230, %v230
  %v235 = vpack.c.bf16 %v231, %v231
  %v236 = vpack.c.bf16 %v232, %v232
  %v241 = vunpack.c.l.b16 %v233
  %v242 = vunpack.c.l.b16 %v234
  %v243 = vunpack.c.l.b16 %v235
  %v244 = vunpack.c.l.b16 %v236
  %v245 = vpack.c.b16 %v242, %v241
  %v246 = vpack.c.b16 %v244, %v243
  %249 = vst [vmem:[%s3] sm:$0xff] %v245
  %250 = vst [vmem:[%s3 + $0x8] sm:$0xff] %v246
  // Predicated region
  $region14: #{feature_net_forward.10} parent=0 // pred_check
    _
  $region15: #{feature_net_forward.10} parent=0 // pred_check_branch
    %252 = sbr.rel (0) target = $region17
  $region16: #{feature_net_forward.10} parent=0 // pred_region
    _
  $region17: #{feature_net_forward.10} parent=0 // pred_fallthru
    _
  // Predicated region
  $region18: #{feature_net_forward.10} parent=0 // pred_check
    _
  $region19: #{feature_net_forward.10} parent=0 // pred_check_branch
    %254 = sbr.rel (0) target = $region21
  $region20: #{feature_net_forward.10} parent=0 // pred_region
    _
  $region21: #{feature_net_forward.10} parent=0 // pred_fallthru
    _

// kernel: feature_net_forward.11
$region0: #{feature_net_forward.11}
  #allocation0 [shape = 'u32[]', space=smem, size = 0x4, offset = 0x4, fixed_abs, tag = 'smem constant byte address 0x4 - core index']
  #allocation1 [shape = 'u32[144,128]{1,0:T(1,128)}', space=vmem, size = 0x12000, scoped, tag = 'internal scratch']
  %s0 = inlined_call_operand.vmem [shape: bf16[16,200], index: 0, kind: input, shape index: {}]
  %s1 = inlined_call_operand.vmem [shape: bf16[200,128], index: 1, kind: input, shape index: {}]
  %s2 = inlined_call_operand.vmem [shape: f32[16,1], index: 2, kind: input, shape index: {}]
  %s3 = inlined_call_operand.vmem [shape: bf16[16,128], index: 3, kind: output, shape index: {}]
  %s4 = sld [smem:[#allocation0]]
  $region22: #{feature_net_forward.11} parent=0
    _
  %s6 = ssub.s32 1, %s4
  %s7 = scalar_select 0, %s6, %s4
  // Predicated region
  $region2: #{feature_net_forward.11} parent=0 // pred_check
    _
  $region3: #{feature_net_forward.11} parent=0 // pred_check_branch
    %9 = sbr.rel (0) target = $region5
  $region4: #{feature_net_forward.11} parent=0 // pred_region
    _
  $region5: #{feature_net_forward.11} parent=0 // pred_fallthru
    _
  // Predicated region
  $region6: #{feature_net_forward.11} parent=0 // pred_check
    _
  $region7: #{feature_net_forward.11} parent=0 // pred_check_branch
    %11 = sbr.rel (0) target = $region9
  $region8: #{feature_net_forward.11} parent=0 // pred_region
    _
  $region9: #{feature_net_forward.11} parent=0 // pred_fallthru
    _
  // Predicated region
  $region10: #{feature_net_forward.11} parent=0 // pred_check
    _
  $region11: #{feature_net_forward.11} parent=0 // pred_check_branch
    %13 = sbr.rel (0) target = $region13
  $region12: #{feature_net_forward.11} parent=0 // pred_region
    _
  $region13: #{feature_net_forward.11} parent=0 // pred_fallthru
    _
  %v15 = vld [vmem:[%s0] sm:$0xff]
  %v16 = vld [vmem:[%s0 + $0x8] sm:$0xff]
  %v17 = vld [vmem:[%s1] sm:$0xf]
  %v18 = vld [vmem:[%s1 + $0x4] sm:$0xf]
  %v19 = vld [vmem:[%s1 + $0x8] sm:$0xf]
  %v20 = vld [vmem:[%s1 + $0xc] sm:$0xf]
  %v21 = vld [vmem:[%s1 + $0x10] sm:$0xf]
  %v22 = vld [vmem:[%s1 + $0x14] sm:$0xf]
  %v23 = vld [vmem:[%s1 + $0x18] sm:$0xf]
  %v24 = vld [vmem:[%s1 + $0x1c] sm:$0xf]
  %v25 = vld [vmem:[%s1 + $0x20] sm:$0xf]
  %v26 = vld [vmem:[%s1 + $0x24] sm:$0xf]
  %v27 = vld [vmem:[%s1 + $0x28] sm:$0xf]
  %v28 = vld [vmem:[%s1 + $0x2c] sm:$0xf]
  %v29 = vld [vmem:[%s1 + $0x30] sm:$0xf]
  %v30 = vld [vmem:[%s1 + $0x34] sm:$0xf]
  %v31 = vld [vmem:[%s1 + $0x38] sm:$0xf]
  %v32 = vld [vmem:[%s1 + $0x3c] sm:$0xf]
  %v33 = vld [vmem:[%s1 + $0x40] sm:$0xf]
  %v34 = vld [vmem:[%s1 + $0x44] sm:$0xf]
  %v35 = vld [vmem:[%s1 + $0x48] sm:$0xf]
  %v36 = vld [vmem:[%s1 + $0x4c] sm:$0xf]
  %v37 = vld [vmem:[%s1 + $0x50] sm:$0xf]
  %v38 = vld [vmem:[%s1 + $0x54] sm:$0xf]
  %v39 = vld [vmem:[%s1 + $0x58] sm:$0xf]
  %v40 = vld [vmem:[%s1 + $0x5c] sm:$0xf]
  %v41 = vld [vmem:[%s1 + $0x60] sm:$0xf]
  %v42 = vld [vmem:[%s2] sm:$0xff]
  %v43 = vld [vmem:[%s2 + $0x8] sm:$0xff]
  %45 = vset.pattern.permute.xlu0 0
  %46 = vperm.xlu0 %45, %v42
  %v47 = vpop.permute.xlu0 %46
  %50 = vset.pattern.permute.xlu0 0
  %51 = vperm.xlu0 %50, %v43
  %v52 = vpop.permute.xlu0 %51
  %v56 = vunpack.c.l.b16 %v15
  %v57 = vunpack.c.h.b16 %v15
  %v58 = vunpack.c.l.b16 %v16
  %v59 = vunpack.c.h.b16 %v16
  %v60 = vpack.c.b16 %v58, %v56
  %v61 = vpack.c.b16 %v59, %v57
  %v88 = vunpack.c.l.b16 %v17
  %v89 = vunpack.c.l.b16 %v18
  %v90 = vunpack.c.l.b16 %v19
  %v91 = vunpack.c.l.b16 %v20
  %v92 = vunpack.c.l.b16 %v21
  %v93 = vunpack.c.l.b16 %v22
  %v94 = vunpack.c.l.b16 %v23
  %v95 = vunpack.c.l.b16 %v24
  %v96 = vunpack.c.l.b16 %v25
  %v97 = vunpack.c.l.b16 %v26
  %v98 = vunpack.c.l.b16 %v27
  %v99 = vunpack.c.l.b16 %v28
  %v100 = vunpack.c.l.b16 %v29
  %v101 = vunpack.c.l.b16 %v30
  %v102 = vunpack.c.l.b16 %v31
  %v103 = vunpack.c.l.b16 %v32
  %v104 = vunpack.c.l.b16 %v33
  %v105 = vunpack.c.l.b16 %v34
  %v106 = vunpack.c.l.b16 %v35
  %v107 = vunpack.c.l.b16 %v36
  %v108 = vunpack.c.l.b16 %v37
  %v109 = vunpack.c.l.b16 %v38
  %v110 = vunpack.c.l.b16 %v39
  %v111 = vunpack.c.l.b16 %v40
  %v112 = vunpack.c.l.b16 %v41
  %v113 = vpack.c.b16 %v89, %v88
  %v114 = vpack.c.b16 %v91, %v90
  %v115 = vpack.c.b16 %v93, %v92
  %v116 = vpack.c.b16 %v95, %v94
  %v117 = vpack.c.b16 %v97, %v96
  %v118 = vpack.c.b16 %v99, %v98
  %v119 = vpack.c.b16 %v101, %v100
  %v120 = vpack.c.b16 %v103, %v102
  %v121 = vpack.c.b16 %v105, %v104
  %v122 = vpack.c.b16 %v107, %v106
  %v123 = vpack.c.b16 %v109, %v108
  %v124 = vpack.c.b16 %v111, %v110
  %v125 = vpack.c.b16 %v112, %v112
  %vm138 = vcmask 588800
  %v140 = vsel %vm138, %v61, 0
  %vm142 = vcmask 1043456
  %v144 = vsel %vm142, %v125, 0
  %146 = vmatprep.subr.bf16.mxu0 0
  %147 = vmatpush1.bf16.msra.mxu0 %v113
  %148 = vmatprep.subr.bf16.mxu0 0
  %149 = vmatpush1.bf16.msra.mxu0 %v114
  %150 = vmatprep.subr.bf16.mxu0 0
  %151 = vmatpush1.bf16.msra.mxu0 %v115
  %152 = vmatprep.subr.bf16.mxu0 0
  %153 = vmatpush1.bf16.msra.mxu0 %v116
  %154 = vmatprep.subr.bf16.mxu0 0
  %155 = vmatpush1.bf16.msra.mxu0 %v117
  %156 = vmatprep.subr.bf16.mxu0 0
  %157 = vmatpush1.bf16.msra.mxu0 %v118
  %158 = vmatprep.subr.bf16.mxu0 0
  %159 = vmatpush1.bf16.msra.mxu0 %v119
  %160 = vmatprep.subr.bf16.mxu0 0
  %161 = vmatpush1.bf16.msra.mxu0 %v120
  %162 = vmatprep.subr.bf16.mxu0 0
  %163 = vmatpush1.bf16.msra.mxu0 %v121
  %164 = vmatprep.subr.bf16.mxu0 0
  %165 = vmatpush1.bf16.msra.mxu0 %v122
  %166 = vmatprep.subr.bf16.mxu0 0
  %167 = vmatpush1.bf16.msra.mxu0 %v123
  %168 = vmatprep.subr.bf16.mxu0 0
  %169 = vmatpush1.bf16.msra.mxu0 %v124
  %170 = vmatprep.subr.bf16.mxu0 0
  %171 = vmatpush1.bf16.msra.mxu0 %v144
  %172 = vmatprep.subr.bf16.mxu0 0
  %173 = vmatpush1.bf16.msra.mxu0 0
  %174 = vmatprep.subr.bf16.mxu0 0
  %175 = vmatpush1.bf16.msra.mxu0 0
  %176 = vmatprep.subr.bf16.mxu0 0
  %177 = vmatpush1.bf16.msra.mxu0 0
  %178 = vmatprep.mubr.bf16.mxu0 %v140
  %179 = vmatmul.mubr.bf16.gmra.mrb[0].mxu0 %v60
  %v180 = vpop.f32.mrb[0].mxu0
  %v181 = vadd.f32 %v47, %v180
  %v182 = vpop.f32.mrb[0].mxu0
  %v183 = vpop.f32.mrb[0].mxu0
  %v184 = vadd.f32 %v52, %v183
  %v185 = vpop.f32.mrb[0].mxu0
  %186 = vdwg.mxu0
  %v187 = vmax.f32 %v181, 0.0
  %v188 = vmax.f32 %v184, 0.0
  %v189 = vpack.c.bf16 %v188, %v187
  %v191 = vunpack.c.l.b16 %v189
  %v192 = vunpack.c.h.b16 %v189
  %v193 = vpack.c.b16 %v191, %v191
  %v194 = vpack.c.b16 %v192, %v192
  %197 = vst [vmem:[%s3] sm:$0xf] %v193
  %198 = vst [vmem:[%s3 + $0x4] sm:$0xf] %v194
  // Predicated region
  $region14: #{feature_net_forward.11} parent=0 // pred_check
    _
  $region15: #{feature_net_forward.11} parent=0 // pred_check_branch
    %200 = sbr.rel (0) target = $region17
  $region16: #{feature_net_forward.11} parent=0 // pred_region
    _
  $region17: #{feature_net_forward.11} parent=0 // pred_fallthru
    _
  // Predicated region
  $region18: #{feature_net_forward.11} parent=0 // pred_check
    _
  $region19: #{feature_net_forward.11} parent=0 // pred_check_branch
    %202 = sbr.rel (0) target = $region21
  $region20: #{feature_net_forward.11} parent=0 // pred_region
    _
  $region21: #{feature_net_forward.11} parent=0 // pred_fallthru
    _

// kernel: feature_net_forward.12
$region0: #{feature_net_forward.12}
  #allocation0 [shape = 'u32[]', space=smem, size = 0x4, offset = 0x4, fixed_abs, tag = 'smem constant byte address 0x4 - core index']
  #allocation1 [shape = 'u32[144,128]{1,0:T(1,128)}', space=vmem, size = 0x12000, scoped, tag = 'internal scratch']
  %s0 = inlined_call_operand.vmem [shape: bf16[16,144], index: 0, kind: input, shape index: {}]
  %s1 = inlined_call_operand.vmem [shape: bf16[144,128], index: 1, kind: input, shape index: {}]
  %s2 = inlined_call_operand.vmem [shape: f32[16,1], index: 2, kind: input, shape index: {}]
  %s3 = inlined_call_operand.vmem [shape: bf16[16,128], index: 3, kind: output, shape index: {}]
  %s4 = sld [smem:[#allocation0]]
  $region22: #{feature_net_forward.12} parent=0
    _
  %s6 = ssub.s32 1, %s4
  %s7 = scalar_select 0, %s6, %s4
  // Predicated region
  $region2: #{feature_net_forward.12} parent=0 // pred_check
    _
  $region3: #{feature_net_forward.12} parent=0 // pred_check_branch
    %9 = sbr.rel (0) target = $region5
  $region4: #{feature_net_forward.12} parent=0 // pred_region
    _
  $region5: #{feature_net_forward.12} parent=0 // pred_fallthru
    _
  // Predicated region
  $region6: #{feature_net_forward.12} parent=0 // pred_check
    _
  $region7: #{feature_net_forward.12} parent=0 // pred_check_branch
    %11 = sbr.rel (0) target = $region9
  $region8: #{feature_net_forward.12} parent=0 // pred_region
    _
  $region9: #{feature_net_forward.12} parent=0 // pred_fallthru
    _
  // Predicated region
  $region10: #{feature_net_forward.12} parent=0 // pred_check
    _
  $region11: #{feature_net_forward.12} parent=0 // pred_check_branch
    %13 = sbr.rel (0) target = $region13
  $region12: #{feature_net_forward.12} parent=0 // pred_region
    _
  $region13: #{feature_net_forward.12} parent=0 // pred_fallthru
    _
  %v15 = vld [vmem:[%s0] sm:$0xff]
  %v16 = vld [vmem:[%s0 + $0x8] sm:$0xff]
  %v17 = vld [vmem:[%s1] sm:$0xf]
  %v18 = vld [vmem:[%s1 + $0x4] sm:$0xf]
  %v19 = vld [vmem:[%s1 + $0x8] sm:$0xf]
  %v20 = vld [vmem:[%s1 + $0xc] sm:$0xf]
  %v21 = vld [vmem:[%s1 + $0x10] sm:$0xf]
  %v22 = vld [vmem:[%s1 + $0x14] sm:$0xf]
  %v23 = vld [vmem:[%s1 + $0x18] sm:$0xf]
  %v24 = vld [vmem:[%s1 + $0x1c] sm:$0xf]
  %v25 = vld [vmem:[%s1 + $0x20] sm:$0xf]
  %v26 = vld [vmem:[%s1 + $0x24] sm:$0xf]
  %v27 = vld [vmem:[%s1 + $0x28] sm:$0xf]
  %v28 = vld [vmem:[%s1 + $0x2c] sm:$0xf]
  %v29 = vld [vmem:[%s1 + $0x30] sm:$0xf]
  %v30 = vld [vmem:[%s1 + $0x34] sm:$0xf]
  %v31 = vld [vmem:[%s1 + $0x38] sm:$0xf]
  %v32 = vld [vmem:[%s1 + $0x3c] sm:$0xf]
  %v33 = vld [vmem:[%s1 + $0x40] sm:$0xf]
  %v34 = vld [vmem:[%s1 + $0x44] sm:$0xf]
  %v35 = vld [vmem:[%s2] sm:$0xff]
  %v36 = vld [vmem:[%s2 + $0x8] sm:$0xff]
  %38 = vset.pattern.permute.xlu0 0
  %39 = vperm.xlu0 %38, %v35
  %v40 = vpop.permute.xlu0 %39
  %43 = vset.pattern.permute.xlu0 0
  %44 = vperm.xlu0 %43, %v36
  %v45 = vpop.permute.xlu0 %44
  %v49 = vunpack.c.l.b16 %v15
  %v50 = vunpack.c.h.b16 %v15
  %v51 = vunpack.c.l.b16 %v16
  %v52 = vunpack.c.h.b16 %v16
  %v53 = vpack.c.b16 %v51, %v49
  %v54 = vpack.c.b16 %v52, %v50
  %v74 = vunpack.c.l.b16 %v17
  %v75 = vunpack.c.l.b16 %v18
  %v76 = vunpack.c.l.b16 %v19
  %v77 = vunpack.c.l.b16 %v20
  %v78 = vunpack.c.l.b16 %v21
  %v79 = vunpack.c.l.b16 %v22
  %v80 = vunpack.c.l.b16 %v23
  %v81 = vunpack.c.l.b16 %v24
  %v82 = vunpack.c.l.b16 %v25
  %v83 = vunpack.c.l.b16 %v26
  %v84 = vunpack.c.l.b16 %v27
  %v85 = vunpack.c.l.b16 %v28
  %v86 = vunpack.c.l.b16 %v29
  %v87 = vunpack.c.l.b16 %v30
  %v88 = vunpack.c.l.b16 %v31
  %v89 = vunpack.c.l.b16 %v32
  %v90 = vunpack.c.l.b16 %v33
  %v91 = vunpack.c.l.b16 %v34
  %v92 = vpack.c.b16 %v75, %v74
  %v93 = vpack.c.b16 %v77, %v76
  %v94 = vpack.c.b16 %v79, %v78
  %v95 = vpack.c.b16 %v81, %v80
  %v96 = vpack.c.b16 %v83, %v82
  %v97 = vpack.c.b16 %v85, %v84
  %v98 = vpack.c.b16 %v87, %v86
  %v99 = vpack.c.b16 %v89, %v88
  %v100 = vpack.c.b16 %v91, %v90
  %vm110 = vcmask 130048
  %v112 = vsel %vm110, %v54, 0
  %114 = vmatprep.subr.bf16.mxu0 0
  %115 = vmatpush1.bf16.msra.mxu0 %v92
  %116 = vmatprep.subr.bf16.mxu0 0
  %117 = vmatpush1.bf16.msra.mxu0 %v93
  %118 = vmatprep.subr.bf16.mxu0 0
  %119 = vmatpush1.bf16.msra.mxu0 %v94
  %120 = vmatprep.subr.bf16.mxu0 0
  %121 = vmatpush1.bf16.msra.mxu0 %v95
  %122 = vmatprep.subr.bf16.mxu0 0
  %123 = vmatpush1.bf16.msra.mxu0 %v96
  %124 = vmatprep.subr.bf16.mxu0 0
  %125 = vmatpush1.bf16.msra.mxu0 %v97
  %126 = vmatprep.subr.bf16.mxu0 0
  %127 = vmatpush1.bf16.msra.mxu0 %v98
  %128 = vmatprep.subr.bf16.mxu0 0
  %129 = vmatpush1.bf16.msra.mxu0 %v99
  %130 = vmatprep.subr.bf16.mxu0 0
  %131 = vmatpush1.bf16.msra.mxu0 %v100
  %132 = vmatprep.subr.bf16.mxu0 0
  %133 = vmatpush1.bf16.msra.mxu0 0
  %134 = vmatprep.subr.bf16.mxu0 0
  %135 = vmatpush1.bf16.msra.mxu0 0
  %136 = vmatprep.subr.bf16.mxu0 0
  %137 = vmatpush1.bf16.msra.mxu0 0
  %138 = vmatprep.subr.bf16.mxu0 0
  %139 = vmatpush1.bf16.msra.mxu0 0
  %140 = vmatprep.subr.bf16.mxu0 0
  %141 = vmatpush1.bf16.msra.mxu0 0
  %142 = vmatprep.subr.bf16.mxu0 0
  %143 = vmatpush1.bf16.msra.mxu0 0
  %144 = vmatprep.subr.bf16.mxu0 0
  %145 = vmatpush1.bf16.msra.mxu0 0
  %146 = vmatprep.mubr.bf16.mxu0 %v112
  %147 = vmatmul.mubr.bf16.gmra.mrb[0].mxu0 %v53
  %v148 = vpop.f32.mrb[0].mxu0
  %v149 = vadd.f32 %v40, %v148
  %v150 = vpop.f32.mrb[0].mxu0
  %v151 = vpop.f32.mrb[0].mxu0
  %v152 = vadd.f32 %v45, %v151
  %v153 = vpop.f32.mrb[0].mxu0
  %154 = vdwg.mxu0
  %v155 = vmax.f32 %v149, 0.0
  %v156 = vmax.f32 %v152, 0.0
  %v157 = vpack.c.bf16 %v156, %v155
  %v159 = vunpack.c.l.b16 %v157
  %v160 = vunpack.c.h.b16 %v157
  %v161 = vpack.c.b16 %v159, %v159
  %v162 = vpack.c.b16 %v160, %v160
  %165 = vst [vmem:[%s3] sm:$0xf] %v161
  %166 = vst [vmem:[%s3 + $0x4] sm:$0xf] %v162
  // Predicated region
  $region14: #{feature_net_forward.12} parent=0 // pred_check
    _
  $region15: #{feature_net_forward.12} parent=0 // pred_check_branch
    %168 = sbr.rel (0) target = $region17
  $region16: #{feature_net_forward.12} parent=0 // pred_region
    _
  $region17: #{feature_net_forward.12} parent=0 // pred_fallthru
    _
  // Predicated region
  $region18: #{feature_net_forward.12} parent=0 // pred_check
    _
  $region19: #{feature_net_forward.12} parent=0 // pred_check_branch
    %170 = sbr.rel (0) target = $region21
  $region20: #{feature_net_forward.12} parent=0 // pred_region
    _
  $region21: #{feature_net_forward.12} parent=0 // pred_fallthru
    _

// kernel: feature_net_forward.14
$region0: #{feature_net_forward.14}
  #allocation0 [shape = 'u32[]', space=smem, size = 0x4, offset = 0x4, fixed_abs, tag = 'smem constant byte address 0x4 - core index']
  #allocation1 [shape = 'u32[144,128]{1,0:T(1,128)}', space=vmem, size = 0x12000, scoped, tag = 'internal scratch']
  %s0 = inlined_call_operand.vmem [shape: bf16[32,400], index: 0, kind: input, shape index: {}]
  %s1 = inlined_call_operand.vmem [shape: bf16[400,128], index: 1, kind: input, shape index: {}]
  %s2 = inlined_call_operand.vmem [shape: f32[32,1], index: 2, kind: input, shape index: {}]
  %s3 = inlined_call_operand.vmem [shape: bf16[32,128], index: 3, kind: output, shape index: {}]
  %s4 = sld [smem:[#allocation0]]
  $region22: #{feature_net_forward.14} parent=0
    _
  %s6 = ssub.s32 1, %s4
  %s7 = scalar_select 0, %s6, %s4
  // Predicated region
  $region2: #{feature_net_forward.14} parent=0 // pred_check
    _
  $region3: #{feature_net_forward.14} parent=0 // pred_check_branch
    %9 = sbr.rel (0) target = $region5
  $region4: #{feature_net_forward.14} parent=0 // pred_region
    _
  $region5: #{feature_net_forward.14} parent=0 // pred_fallthru
    _
  // Predicated region
  $region6: #{feature_net_forward.14} parent=0 // pred_check
    _
  $region7: #{feature_net_forward.14} parent=0 // pred_check_branch
    %11 = sbr.rel (0) target = $region9
  $region8: #{feature_net_forward.14} parent=0 // pred_region
    _
  $region9: #{feature_net_forward.14} parent=0 // pred_fallthru
    _
  // Predicated region
  $region10: #{feature_net_forward.14} parent=0 // pred_check
    _
  $region11: #{feature_net_forward.14} parent=0 // pred_check_branch
    %13 = sbr.rel (0) target = $region13
  $region12: #{feature_net_forward.14} parent=0 // pred_region
    _
  $region13: #{feature_net_forward.14} parent=0 // pred_fallthru
    _
  %v15 = vld [vmem:[%s0] sm:$0xff]
  %v16 = vld [vmem:[%s0 + $0x8] sm:$0xff]
  %v17 = vld [vmem:[%s0 + $0x10] sm:$0xff]
  %v18 = vld [vmem:[%s0 + $0x18] sm:$0xff]
  %v19 = vld [vmem:[%s0 + $0x20] sm:$0xff]
  %v20 = vld [vmem:[%s0 + $0x28] sm:$0xff]
  %v21 = vld [vmem:[%s0 + $0x30] sm:$0xff]
  %v22 = vld [vmem:[%s0 + $0x38] sm:$0xff]
  %v23 = vld [vmem:[%s1] sm:$0xf]
  %v24 = vld [vmem:[%s1 + $0x4] sm:$0xf]
  %v25 = vld [vmem:[%s1 + $0x8] sm:$0xf]
  %v26 = vld [vmem:[%s1 + $0xc] sm:$0xf]
  %v27 = vld [vmem:[%s1 + $0x10] sm:$0xf]
  %v28 = vld [vmem:[%s1 + $0x14] sm:$0xf]
  %v29 = vld [vmem:[%s1 + $0x18] sm:$0xf]
  %v30 = vld [vmem:[%s1 + $0x1c] sm:$0xf]
  %v31 = vld [vmem:[%s1 + $0x20] sm:$0xf]
  %v32 = vld [vmem:[%s1 + $0x24] sm:$0xf]
  %v33 = vld [vmem:[%s1 + $0x28] sm:$0xf]
  %v34 = vld [vmem:[%s1 + $0x2c] sm:$0xf]
  %v35 = vld [vmem:[%s1 + $0x30] sm:$0xf]
  %v36 = vld [vmem:[%s1 + $0x34] sm:$0xf]
  %v37 = vld [vmem:[%s1 + $0x38] sm:$0xf]
  %v38 = vld [vmem:[%s1 + $0x3c] sm:$0xf]
  %v39 = vld [vmem:[%s1 + $0x40] sm:$0xf]
  %v40 = vld [vmem:[%s1 + $0x44] sm:$0xf]
  %v41 = vld [vmem:[%s1 + $0x48] sm:$0xf]
  %v42 = vld [vmem:[%s1 + $0x4c] sm:$0xf]
  %v43 = vld [vmem:[%s1 + $0x50] sm:$0xf]
  %v44 = vld [vmem:[%s1 + $0x54] sm:$0xf]
  %v45 = vld [vmem:[%s1 + $0x58] sm:$0xf]
  %v46 = vld [vmem:[%s1 + $0x5c] sm:$0xf]
  %v47 = vld [vmem:[%s1 + $0x60] sm:$0xf]
  %v48 = vld [vmem:[%s1 + $0x64] sm:$0xf]
  %v49 = vld [vmem:[%s1 + $0x68] sm:$0xf]
  %v50 = vld [vmem:[%s1 + $0x6c] sm:$0xf]
  %v51 = vld [vmem:[%s1 + $0x70] sm:$0xf]
  %v52 = vld [vmem:[%s1 + $0x74] sm:$0xf]
  %v53 = vld [vmem:[%s1 + $0x78] sm:$0xf]
  %v54 = vld [vmem:[%s1 + $0x7c] sm:$0xf]
  %v55 = vld [vmem:[%s1 + $0x80] sm:$0xf]
  %v56 = vld [vmem:[%s1 + $0x84] sm:$0xf]
  %v57 = vld [vmem:[%s1 + $0x88] sm:$0xf]
  %v58 = vld [vmem:[%s1 + $0x8c] sm:$0xf]
  %v59 = vld [vmem:[%s1 + $0x90] sm:$0xf]
  %v60 = vld [vmem:[%s1 + $0x94] sm:$0xf]
  %v61 = vld [vmem:[%s1 + $0x98] sm:$0xf]
  %v62 = vld [vmem:[%s1 + $0x9c] sm:$0xf]
  %v63 = vld [vmem:[%s1 + $0xa0] sm:$0xf]
  %v64 = vld [vmem:[%s1 + $0xa4] sm:$0xf]
  %v65 = vld [vmem:[%s1 + $0xa8] sm:$0xf]
  %v66 = vld [vmem:[%s1 + $0xac] sm:$0xf]
  %v67 = vld [vmem:[%s1 + $0xb0] sm:$0xf]
  %v68 = vld [vmem:[%s1 + $0xb4] sm:$0xf]
  %v69 = vld [vmem:[%s1 + $0xb8] sm:$0xf]
  %v70 = vld [vmem:[%s1 + $0xbc] sm:$0xf]
  %v71 = vld [vmem:[%s1 + $0xc0] sm:$0xf]
  %v72 = vld [vmem:[%s1 + $0xc4] sm:$0xf]
  %v73 = vld [vmem:[%s2] sm:$0xff]
  %v74 = vld [vmem:[%s2 + $0x8] sm:$0xff]
  %v75 = vld [vmem:[%s2 + $0x10] sm:$0xff]
  %v76 = vld [vmem:[%s2 + $0x18] sm:$0xff]
  %78 = vset.pattern.permute.xlu0 0
  %79 = vperm.xlu0 %78, %v73
  %v80 = vpop.permute.xlu0 %79
  %83 = vset.pattern.permute.xlu0 0
  %84 = vperm.xlu0 %83, %v74
  %v85 = vpop.permute.xlu0 %84
  %88 = vset.pattern.permute.xlu0 0
  %89 = vperm.xlu0 %88, %v75
  %v90 = vpop.permute.xlu0 %89
  %93 = vset.pattern.permute.xlu0 0
  %94 = vperm.xlu0 %93, %v76
  %v95 = vpop.permute.xlu0 %94
  %v105 = vunpack.c.l.b16 %v15
  %v106 = vunpack.c.h.b16 %v15
  %v107 = vunpack.c.l.b16 %v16
  %v108 = vunpack.c.h.b16 %v16
  %v109 = vunpack.c.l.b16 %v17
  %v110 = vunpack.c.h.b16 %v17
  %v111 = vunpack.c.l.b16 %v18
  %v112 = vunpack.c.h.b16 %v18
  %v113 = vunpack.c.l.b16 %v19
  %v114 = vunpack.c.h.b16 %v19
  %v115 = vunpack.c.l.b16 %v20
  %v116 = vunpack.c.h.b16 %v20
  %v117 = vunpack.c.l.b16 %v21
  %v118 = vunpack.c.h.b16 %v21
  %v119 = vunpack.c.l.b16 %v22
  %v120 = vunpack.c.h.b16 %v22
  %v121 = vpack.c.b16 %v109, %v105
  %v122 = vpack.c.b16 %v110, %v106
  %v123 = vpack.c.b16 %v111, %v107
  %v124 = vpack.c.b16 %v112, %v108
  %v125 = vpack.c.b16 %v117, %v113
  %v126 = vpack.c.b16 %v118, %v114
  %v127 = vpack.c.b16 %v119, %v115
  %v128 = vpack.c.b16 %v120, %v116
  %v185 = vunpack.c.l.b16 %v23
  %v186 = vunpack.c.l.b16 %v24
  %v187 = vunpack.c.l.b16 %v25
  %v188 = vunpack.c.l.b16 %v26
  %v189 = vunpack.c.l.b16 %v27
  %v190 = vunpack.c.l.b16 %v28
  %v191 = vunpack.c.l.b16 %v29
  %v192 = vunpack.c.l.b16 %v30
  %v193 = vunpack.c.l.b16 %v31
  %v194 = vunpack.c.l.b16 %v32
  %v195 = vunpack.c.l.b16 %v33
  %v196 = vunpack.c.l.b16 %v34
  %v197 = vunpack.c.l.b16 %v35
  %v198 = vunpack.c.l.b16 %v36
  %v199 = vunpack.c.l.b16 %v37
  %v200 = vunpack.c.l.b16 %v38
  %v201 = vunpack.c.l.b16 %v39
  %v202 = vunpack.c.l.b16 %v40
  %v203 = vunpack.c.l.b16 %v41
  %v204 = vunpack.c.l.b16 %v42
  %v205 = vunpack.c.l.b16 %v43
  %v206 = vunpack.c.l.b16 %v44
  %v207 = vunpack.c.l.b16 %v45
  %v208 = vunpack.c.l.b16 %v46
  %v209 = vunpack.c.l.b16 %v47
  %v210 = vunpack.c.l.b16 %v48
  %v211 = vunpack.c.l.b16 %v49
  %v212 = vunpack.c.l.b16 %v50
  %v213 = vunpack.c.l.b16 %v51
  %v214 = vunpack.c.l.b16 %v52
  %v215 = vunpack.c.l.b16 %v53
  %v216 = vunpack.c.l.b16 %v54
  %v217 = vunpack.c.l.b16 %v55
  %v218 = vunpack.c.l.b16 %v56
  %v219 = vunpack.c.l.b16 %v57
  %v220 = vunpack.c.l.b16 %v58
  %v221 = vunpack.c.l.b16 %v59
  %v222 = vunpack.c.l.b16 %v60
  %v223 = vunpack.c.l.b16 %v61
  %v224 = vunpack.c.l.b16 %v62
  %v225 = vunpack.c.l.b16 %v63
  %v226 = vunpack.c.l.b16 %v64
  %v227 = vunpack.c.l.b16 %v65
  %v228 = vunpack.c.l.b16 %v66
  %v229 = vunpack.c.l.b16 %v67
  %v230 = vunpack.c.l.b16 %v68
  %v231 = vunpack.c.l.b16 %v69
  %v232 = vunpack.c.l.b16 %v70
  %v233 = vunpack.c.l.b16 %v71
  %v234 = vunpack.c.l.b16 %v72
  %v235 = vpack.c.b16 %v186, %v185
  %v236 = vpack.c.b16 %v188, %v187
  %v237 = vpack.c.b16 %v190, %v189
  %v238 = vpack.c.b16 %v192, %v191
  %v239 = vpack.c.b16 %v194, %v193
  %v240 = vpack.c.b16 %v196, %v195
  %v241 = vpack.c.b16 %v198, %v197
  %v242 = vpack.c.b16 %v200, %v199
  %v243 = vpack.c.b16 %v202, %v201
  %v244 = vpack.c.b16 %v204, %v203
  %v245 = vpack.c.b16 %v206, %v205
  %v246 = vpack.c.b16 %v208, %v207
  %v247 = vpack.c.b16 %v210, %v209
  %v248 = vpack.c.b16 %v212, %v211
  %v249 = vpack.c.b16 %v214, %v213
  %v250 = vpack.c.b16 %v216, %v215
  %v251 = vpack.c.b16 %v218, %v217
  %v252 = vpack.c.b16 %v220, %v219
  %v253 = vpack.c.b16 %v222, %v221
  %v254 = vpack.c.b16 %v224, %v223
  %v255 = vpack.c.b16 %v226, %v225
  %v256 = vpack.c.b16 %v228, %v227
  %v257 = vpack.c.b16 %v230, %v229
  %v258 = vpack.c.b16 %v232, %v231
  %v259 = vpack.c.b16 %v234, %v233
  %vm285 = vcmask 130048
  %v287 = vsel %vm285, %v124, 0
  %v290 = vsel %vm285, %v128, 0
  %292 = vmatprep.subr.bf16.mxu0 0
  %293 = vmatpush1.bf16.msra.mxu0 %v235
  %294 = vmatprep.subr.bf16.mxu0 0
  %295 = vmatpush1.bf16.msra.mxu0 %v236
  %296 = vmatprep.subr.bf16.mxu0 0
  %297 = vmatpush1.bf16.msra.mxu0 %v237
  %298 = vmatprep.subr.bf16.mxu0 0
  %299 = vmatpush1.bf16.msra.mxu0 %v238
  %300 = vmatprep.subr.bf16.mxu0 0
  %301 = vmatpush1.bf16.msra.mxu0 %v239
  %302 = vmatprep.subr.bf16.mxu0 0
  %303 = vmatpush1.bf16.msra.mxu0 %v240
  %304 = vmatprep.subr.bf16.mxu0 0
  %305 = vmatpush1.bf16.msra.mxu0 %v241
  %306 = vmatprep.subr.bf16.mxu0 0
  %307 = vmatpush1.bf16.msra.mxu0 %v242
  %308 = vmatprep.subr.bf16.mxu0 0
  %309 = vmatpush1.bf16.msra.mxu0 %v243
  %310 = vmatprep.subr.bf16.mxu0 0
  %311 = vmatpush1.bf16.msra.mxu0 %v244
  %312 = vmatprep.subr.bf16.mxu0 0
  %313 = vmatpush1.bf16.msra.mxu0 %v245
  %314 = vmatprep.subr.bf16.mxu0 0
  %315 = vmatpush1.bf16.msra.mxu0 %v246
  %316 = vmatprep.subr.bf16.mxu0 0
  %317 = vmatpush1.bf16.msra.mxu0 %v247
  %318 = vmatprep.subr.bf16.mxu0 0
  %319 = vmatpush1.bf16.msra.mxu0 %v248
  %320 = vmatprep.subr.bf16.mxu0 0
  %321 = vmatpush1.bf16.msra.mxu0 %v249
  %322 = vmatprep.subr.bf16.mxu0 0
  %323 = vmatpush1.bf16.msra.mxu0 %v250
  %324 = vmatprep.mubr.bf16.mxu0 %v122
  %325 = vmatmul.mubr.bf16.gmra.mrb[0].mxu0 %v121
  %v326 = vpop.f32.mrb[0].mxu0
  %v327 = vadd.f32 %v80, %v326
  %v328 = vpop.f32.mrb[0].mxu0
  %v329 = vpop.f32.mrb[0].mxu0
  %v330 = vadd.f32 %v85, %v329
  %v331 = vpop.f32.mrb[0].mxu0
  %332 = vmatprep.mubr.bf16.mxu0 %v126
  %333 = vmatmul.mubr.bf16.gmra.mrb[0].mxu0 %v125
  %v334 = vpop.f32.mrb[0].mxu0
  %v335 = vadd.f32 %v90, %v334
  %v336 = vpop.f32.mrb[0].mxu0
  %v337 = vpop.f32.mrb[0].mxu0
  %v338 = vadd.f32 %v95, %v337
  %v339 = vpop.f32.mrb[0].mxu0
  %340 = vdwg.mxu0
  %341 = vmatprep.subr.bf16.mxu0 0
  %342 = vmatpush1.bf16.msra.mxu0 %v251
  %343 = vmatprep.subr.bf16.mxu0 0
  %344 = vmatpush1.bf16.msra.mxu0 %v252
  %345 = vmatprep.subr.bf16.mxu0 0
  %346 = vmatpush1.bf16.msra.mxu0 %v253
  %347 = vmatprep.subr.bf16.mxu0 0
  %348 = vmatpush1.bf16.msra.mxu0 %v254
  %349 = vmatprep.subr.bf16.mxu0 0
  %350 = vmatpush1.bf16.msra.mxu0 %v255
  %351 = vmatprep.subr.bf16.mxu0 0
  %352 = vmatpush1.bf16.msra.mxu0 %v256
  %353 = vmatprep.subr.bf16.mxu0 0
  %354 = vmatpush1.bf16.msra.mxu0 %v257
  %355 = vmatprep.subr.bf16.mxu0 0
  %356 = vmatpush1.bf16.msra.mxu0 %v258
  %357 = vmatprep.subr.bf16.mxu0 0
  %358 = vmatpush1.bf16.msra.mxu0 %v259
  %359 = vmatprep.subr.bf16.mxu0 0
  %360 = vmatpush1.bf16.msra.mxu0 0
  %361 = vmatprep.subr.bf16.mxu0 0
  %362 = vmatpush1.bf16.msra.mxu0 0
  %363 = vmatprep.subr.bf16.mxu0 0
  %364 = vmatpush1.bf16.msra.mxu0 0
  %365 = vmatprep.subr.bf16.mxu0 0
  %366 = vmatpush1.bf16.msra.mxu0 0
  %367 = vmatprep.subr.bf16.mxu0 0
  %368 = vmatpush1.bf16.msra.mxu0 0
  %369 = vmatprep.subr.bf16.mxu0 0
  %370 = vmatpush1.bf16.msra.mxu0 0
  %371 = vmatprep.subr.bf16.mxu0 0
  %372 = vmatpush1.bf16.msra.mxu0 0
  %373 = vmatprep.mubr.bf16.mxu0 %v287
  %374 = vmatmul.mubr.bf16.gmra.mrb[0].mxu0 %v123
  %v375 = vpop.f32.mrb[0].mxu0
  %v376 = vadd.f32 %v327, %v375
  %v377 = vpop.f32.mrb[0].mxu0
  %v378 = vpop.f32.mrb[0].mxu0
  %v379 = vadd.f32 %v330, %v378
  %v380 = vpop.f32.mrb[0].mxu0
  %381 = vmatprep.mubr.bf16.mxu0 %v290
  %382 = vmatmul.mubr.bf16.gmra.mrb[0].mxu0 %v127
  %v383 = vpop.f32.mrb[0].mxu0
  %v384 = vadd.f32 %v335, %v383
  %v385 = vpop.f32.mrb[0].mxu0
  %v386 = vpop.f32.mrb[0].mxu0
  %v387 = vadd.f32 %v338, %v386
  %v388 = vpop.f32.mrb[0].mxu0
  %389 = vdwg.mxu0
  %v390 = vmax.f32 %v376, 0.0
  %v391 = vmax.f32 %v379, 0.0
  %v392 = vmax.f32 %v384, 0.0
  %v393 = vmax.f32 %v387, 0.0
  %v394 = vpack.c.bf16 %v391, %v390
  %v395 = vpack.c.bf16 %v393, %v392
  %v398 = vunpack.c.l.b16 %v394
  %v399 = vunpack.c.h.b16 %v394
  %v400 = vunpack.c.l.b16 %v395
  %v401 = vunpack.c.h.b16 %v395
  %v402 = vpack.c.b16 %v398, %v398
  %v403 = vpack.c.b16 %v399, %v399
  %v404 = vpack.c.b16 %v400, %v400
  %v405 = vpack.c.b16 %v401, %v401
  %410 = vst [vmem:[%s3] sm:$0xf] %v402
  %411 = vst [vmem:[%s3 + $0x4] sm:$0xf] %v403
  %412 = vst [vmem:[%s3 + $0x8] sm:$0xf] %v404
  %413 = vst [vmem:[%s3 + $0xc] sm:$0xf] %v405
  // Predicated region
  $region14: #{feature_net_forward.14} parent=0 // pred_check
    _
  $region15: #{feature_net_forward.14} parent=0 // pred_check_branch
    %415 = sbr.rel (0) target = $region17
  $region16: #{feature_net_forward.14} parent=0 // pred_region
    _
  $region17: #{feature_net_forward.14} parent=0 // pred_fallthru
    _
  // Predicated region
  $region18: #{feature_net_forward.14} parent=0 // pred_check
    _
  $region19: #{feature_net_forward.14} parent=0 // pred_check_branch
    %417 = sbr.rel (0) target = $region21
  $region20: #{feature_net_forward.14} parent=0 // pred_region
    _
  $region21: #{feature_net_forward.14} parent=0 // pred_fallthru
    _

// kernel: feature_net_forward.15
$region0: #{feature_net_forward.15}
  #allocation0 [shape = 'u32[]', space=smem, size = 0x4, offset = 0x4, fixed_abs, tag = 'smem constant byte address 0x4 - core index']
  #allocation1 [shape = 'u32[144,128]{1,0:T(1,128)}', space=vmem, size = 0x12000, scoped, tag = 'internal scratch']
  %s0 = inlined_call_operand.vmem [shape: bf16[32,288], index: 0, kind: input, shape index: {}]
  %s1 = inlined_call_operand.vmem [shape: bf16[288,128], index: 1, kind: input, shape index: {}]
  %s2 = inlined_call_operand.vmem [shape: f32[32,1], index: 2, kind: input, shape index: {}]
  %s3 = inlined_call_operand.vmem [shape: bf16[32,128], index: 3, kind: output, shape index: {}]
  %s4 = sld [smem:[#allocation0]]
  $region22: #{feature_net_forward.15} parent=0
    _
  %s6 = ssub.s32 1, %s4
  %s7 = scalar_select 0, %s6, %s4
  // Predicated region
  $region2: #{feature_net_forward.15} parent=0 // pred_check
    _
  $region3: #{feature_net_forward.15} parent=0 // pred_check_branch
    %9 = sbr.rel (0) target = $region5
  $region4: #{feature_net_forward.15} parent=0 // pred_region
    _
  $region5: #{feature_net_forward.15} parent=0 // pred_fallthru
    _
  // Predicated region
  $region6: #{feature_net_forward.15} parent=0 // pred_check
    _
  $region7: #{feature_net_forward.15} parent=0 // pred_check_branch
    %11 = sbr.rel (0) target = $region9
  $region8: #{feature_net_forward.15} parent=0 // pred_region
    _
  $region9: #{feature_net_forward.15} parent=0 // pred_fallthru
    _
  // Predicated region
  $region10: #{feature_net_forward.15} parent=0 // pred_check
    _
  $region11: #{feature_net_forward.15} parent=0 // pred_check_branch
    %13 = sbr.rel (0) target = $region13
  $region12: #{feature_net_forward.15} parent=0 // pred_region
    _
  $region13: #{feature_net_forward.15} parent=0 // pred_fallthru
    _
  %v15 = vld [vmem:[%s0] sm:$0xff]
  %v16 = vld [vmem:[%s0 + $0x8] sm:$0xf]
  %v17 = vld [vmem:[%s0 + $0xc] sm:$0xff]
  %v18 = vld [vmem:[%s0 + $0x14] sm:$0xf]
  %v19 = vld [vmem:[%s0 + $0x18] sm:$0xff]
  %v20 = vld [vmem:[%s0 + $0x20] sm:$0xf]
  %v21 = vld [vmem:[%s0 + $0x24] sm:$0xff]
  %v22 = vld [vmem:[%s0 + $0x2c] sm:$0xf]
  %v23 = vld [vmem:[%s1] sm:$0xf]
  %v24 = vld [vmem:[%s1 + $0x4] sm:$0xf]
  %v25 = vld [vmem:[%s1 + $0x8] sm:$0xf]
  %v26 = vld [vmem:[%s1 + $0xc] sm:$0xf]
  %v27 = vld [vmem:[%s1 + $0x10] sm:$0xf]
  %v28 = vld [vmem:[%s1 + $0x14] sm:$0xf]
  %v29 = vld [vmem:[%s1 + $0x18] sm:$0xf]
  %v30 = vld [vmem:[%s1 + $0x1c] sm:$0xf]
  %v31 = vld [vmem:[%s1 + $0x20] sm:$0xf]
  %v32 = vld [vmem:[%s1 + $0x24] sm:$0xf]
  %v33 = vld [vmem:[%s1 + $0x28] sm:$0xf]
  %v34 = vld [vmem:[%s1 + $0x2c] sm:$0xf]
  %v35 = vld [vmem:[%s1 + $0x30] sm:$0xf]
  %v36 = vld [vmem:[%s1 + $0x34] sm:$0xf]
  %v37 = vld [vmem:[%s1 + $0x38] sm:$0xf]
  %v38 = vld [vmem:[%s1 + $0x3c] sm:$0xf]
  %v39 = vld [vmem:[%s1 + $0x40] sm:$0xf]
  %v40 = vld [vmem:[%s1 + $0x44] sm:$0xf]
  %v41 = vld [vmem:[%s1 + $0x48] sm:$0xf]
  %v42 = vld [vmem:[%s1 + $0x4c] sm:$0xf]
  %v43 = vld [vmem:[%s1 + $0x50] sm:$0xf]
  %v44 = vld [vmem:[%s1 + $0x54] sm:$0xf]
  %v45 = vld [vmem:[%s1 + $0x58] sm:$0xf]
  %v46 = vld [vmem:[%s1 + $0x5c] sm:$0xf]
  %v47 = vld [vmem:[%s1 + $0x60] sm:$0xf]
  %v48 = vld [vmem:[%s1 + $0x64] sm:$0xf]
  %v49 = vld [vmem:[%s1 + $0x68] sm:$0xf]
  %v50 = vld [vmem:[%s1 + $0x6c] sm:$0xf]
  %v51 = vld [vmem:[%s1 + $0x70] sm:$0xf]
  %v52 = vld [vmem:[%s1 + $0x74] sm:$0xf]
  %v53 = vld [vmem:[%s1 + $0x78] sm:$0xf]
  %v54 = vld [vmem:[%s1 + $0x7c] sm:$0xf]
  %v55 = vld [vmem:[%s1 + $0x80] sm:$0xf]
  %v56 = vld [vmem:[%s1 + $0x84] sm:$0xf]
  %v57 = vld [vmem:[%s1 + $0x88] sm:$0xf]
  %v58 = vld [vmem:[%s1 + $0x8c] sm:$0xf]
  %v59 = vld [vmem:[%s2] sm:$0xff]
  %v60 = vld [vmem:[%s2 + $0x8] sm:$0xff]
  %v61 = vld [vmem:[%s2 + $0x10] sm:$0xff]
  %v62 = vld [vmem:[%s2 + $0x18] sm:$0xff]
  %64 = vset.pattern.permute.xlu0 0
  %65 = vperm.xlu0 %64, %v59
  %v66 = vpop.permute.xlu0 %65
  %69 = vset.pattern.permute.xlu0 0
  %70 = vperm.xlu0 %69, %v60
  %v71 = vpop.permute.xlu0 %70
  %74 = vset.pattern.permute.xlu0 0
  %75 = vperm.xlu0 %74, %v61
  %v76 = vpop.permute.xlu0 %75
  %79 = vset.pattern.permute.xlu0 0
  %80 = vperm.xlu0 %79, %v62
  %v81 = vpop.permute.xlu0 %80
  %v91 = vunpack.c.l.b16 %v15
  %v92 = vunpack.c.h.b16 %v15
  %v93 = vunpack.c.l.b16 %v16
  %v94 = vunpack.c.l.b16 %v17
  %v95 = vunpack.c.h.b16 %v17
  %v96 = vunpack.c.l.b16 %v18
  %v97 = vunpack.c.l.b16 %v19
  %v98 = vunpack.c.h.b16 %v19
  %v99 = vunpack.c.l.b16 %v20
  %v100 = vunpack.c.l.b16 %v21
  %v101 = vunpack.c.h.b16 %v21
  %v102 = vunpack.c.l.b16 %v22
  %v103 = vpack.c.b16 %v94, %v91
  %v104 = vpack.c.b16 %v95, %v92
  %v105 = vpack.c.b16 %v96, %v93
  %v106 = vpack.c.b16 %v100, %v97
  %v107 = vpack.c.b16 %v101, %v98
  %v108 = vpack.c.b16 %v102, %v99
  %v149 = vunpack.c.l.b16 %v23
  %v150 = vunpack.c.l.b16 %v24
  %v151 = vunpack.c.l.b16 %v25
  %v152 = vunpack.c.l.b16 %v26
  %v153 = vunpack.c.l.b16 %v27
  %v154 = vunpack.c.l.b16 %v28
  %v155 = vunpack.c.l.b16 %v29
  %v156 = vunpack.c.l.b16 %v30
  %v157 = vunpack.c.l.b16 %v31
  %v158 = vunpack.c.l.b16 %v32
  %v159 = vunpack.c.l.b16 %v33
  %v160 = vunpack.c.l.b16 %v34
  %v161 = vunpack.c.l.b16 %v35
  %v162 = vunpack.c.l.b16 %v36
  %v163 = vunpack.c.l.b16 %v37
  %v164 = vunpack.c.l.b16 %v38
  %v165 = vunpack.c.l.b16 %v39
  %v166 = vunpack.c.l.b16 %v40
  %v167 = vunpack.c.l.b16 %v41
  %v168 = vunpack.c.l.b16 %v42
  %v169 = vunpack.c.l.b16 %v43
  %v170 = vunpack.c.l.b16 %v44
  %v171 = vunpack.c.l.b16 %v45
  %v172 = vunpack.c.l.b16 %v46
  %v173 = vunpack.c.l.b16 %v47
  %v174 = vunpack.c.l.b16 %v48
  %v175 = vunpack.c.l.b16 %v49
  %v176 = vunpack.c.l.b16 %v50
  %v177 = vunpack.c.l.b16 %v51
  %v178 = vunpack.c.l.b16 %v52
  %v179 = vunpack.c.l.b16 %v53
  %v180 = vunpack.c.l.b16 %v54
  %v181 = vunpack.c.l.b16 %v55
  %v182 = vunpack.c.l.b16 %v56
  %v183 = vunpack.c.l.b16 %v57
  %v184 = vunpack.c.l.b16 %v58
  %v185 = vpack.c.b16 %v150, %v149
  %v186 = vpack.c.b16 %v152, %v151
  %v187 = vpack.c.b16 %v154, %v153
  %v188 = vpack.c.b16 %v156, %v155
  %v189 = vpack.c.b16 %v158, %v157
  %v190 = vpack.c.b16 %v160, %v159
  %v191 = vpack.c.b16 %v162, %v161
  %v192 = vpack.c.b16 %v164, %v163
  %v193 = vpack.c.b16 %v166, %v165
  %v194 = vpack.c.b16 %v168, %v167
  %v195 = vpack.c.b16 %v170, %v169
  %v196 = vpack.c.b16 %v172, %v171
  %v197 = vpack.c.b16 %v174, %v173
  %v198 = vpack.c.b16 %v176, %v175
  %v199 = vpack.c.b16 %v178, %v177
  %v200 = vpack.c.b16 %v180, %v179
  %v201 = vpack.c.b16 %v182, %v181
  %v202 = vpack.c.b16 %v184, %v183
  %vm221 = vcmask 261120
  %v223 = vsel %vm221, %v105, 0
  %v226 = vsel %vm221, %v108, 0
  %228 = vmatprep.subr.bf16.mxu0 0
  %229 = vmatpush1.bf16.msra.mxu0 %v185
  %230 = vmatprep.subr.bf16.mxu0 0
  %231 = vmatpush1.bf16.msra.mxu0 %v186
  %232 = vmatprep.subr.bf16.mxu0 0
  %233 = vmatpush1.bf16.msra.mxu0 %v187
  %234 = vmatprep.subr.bf16.mxu0 0
  %235 = vmatpush1.bf16.msra.mxu0 %v188
  %236 = vmatprep.subr.bf16.mxu0 0
  %237 = vmatpush1.bf16.msra.mxu0 %v189
  %238 = vmatprep.subr.bf16.mxu0 0
  %239 = vmatpush1.bf16.msra.mxu0 %v190
  %240 = vmatprep.subr.bf16.mxu0 0
  %241 = vmatpush1.bf16.msra.mxu0 %v191
  %242 = vmatprep.subr.bf16.mxu0 0
  %243 = vmatpush1.bf16.msra.mxu0 %v192
  %244 = vmatprep.subr.bf16.mxu0 0
  %245 = vmatpush1.bf16.msra.mxu0 %v193
  %246 = vmatprep.subr.bf16.mxu0 0
  %247 = vmatpush1.bf16.msra.mxu0 %v194
  %248 = vmatprep.subr.bf16.mxu0 0
  %249 = vmatpush1.bf16.msra.mxu0 %v195
  %250 = vmatprep.subr.bf16.mxu0 0
  %251 = vmatpush1.bf16.msra.mxu0 %v196
  %252 = vmatprep.subr.bf16.mxu0 0
  %253 = vmatpush1.bf16.msra.mxu0 %v197
  %254 = vmatprep.subr.bf16.mxu0 0
  %255 = vmatpush1.bf16.msra.mxu0 %v198
  %256 = vmatprep.subr.bf16.mxu0 0
  %257 = vmatpush1.bf16.msra.mxu0 %v199
  %258 = vmatprep.subr.bf16.mxu0 0
  %259 = vmatpush1.bf16.msra.mxu0 %v200
  %260 = vmatprep.mubr.bf16.mxu0 %v104
  %261 = vmatmul.mubr.bf16.gmra.mrb[0].mxu0 %v103
  %v262 = vpop.f32.mrb[0].mxu0
  %v263 = vadd.f32 %v66, %v262
  %v264 = vpop.f32.mrb[0].mxu0
  %v265 = vpop.f32.mrb[0].mxu0
  %v266 = vadd.f32 %v71, %v265
  %v267 = vpop.f32.mrb[0].mxu0
  %268 = vmatprep.mubr.bf16.mxu0 %v107
  %269 = vmatmul.mubr.bf16.gmra.mrb[0].mxu0 %v106
  %v270 = vpop.f32.mrb[0].mxu0
  %v271 = vadd.f32 %v76, %v270
  %v272 = vpop.f32.mrb[0].mxu0
  %v273 = vpop.f32.mrb[0].mxu0
  %v274 = vadd.f32 %v81, %v273
  %v275 = vpop.f32.mrb[0].mxu0
  %276 = vdwg.mxu0
  %277 = vmatprep.subr.bf16.mxu0 0
  %278 = vmatpush1.bf16.msra.mxu0 %v201
  %279 = vmatprep.subr.bf16.mxu0 0
  %280 = vmatpush1.bf16.msra.mxu0 %v202
  %281 = vmatprep.subr.bf16.mxu0 0
  %282 = vmatpush1.bf16.msra.mxu0 0
  %283 = vmatprep.subr.bf16.mxu0 0
  %284 = vmatpush1.bf16.msra.mxu0 0
  %285 = vmatprep.subr.bf16.mxu0 0
  %286 = vmatpush1.bf16.msra.mxu0 0
  %287 = vmatprep.subr.bf16.mxu0 0
  %288 = vmatpush1.bf16.msra.mxu0 0
  %289 = vmatprep.subr.bf16.mxu0 0
  %290 = vmatpush1.bf16.msra.mxu0 0
  %291 = vmatprep.subr.bf16.mxu0 0
  %292 = vmatpush1.bf16.msra.mxu0 0
  %293 = vmatprep.subr.bf16.mxu0 0
  %294 = vmatpush1.bf16.msra.mxu0 0
  %295 = vmatprep.subr.bf16.mxu0 0
  %296 = vmatpush1.bf16.msra.mxu0 0
  %297 = vmatprep.subr.bf16.mxu0 0
  %298 = vmatpush1.bf16.msra.mxu0 0
  %299 = vmatprep.subr.bf16.mxu0 0
  %300 = vmatpush1.bf16.msra.mxu0 0
  %301 = vmatprep.subr.bf16.mxu0 0
  %302 = vmatpush1.bf16.msra.mxu0 0
  %303 = vmatprep.subr.bf16.mxu0 0
  %304 = vmatpush1.bf16.msra.mxu0 0
  %305 = vmatprep.subr.bf16.mxu0 0
  %306 = vmatpush1.bf16.msra.mxu0 0
  %307 = vmatprep.subr.bf16.mxu0 0
  %308 = vmatpush1.bf16.msra.mxu0 0
  %309 = vmatprep.mubr.bf16.mxu0 0
  %310 = vmatmul.mubr.bf16.gmra.mrb[0].mxu0 %v223
  %v311 = vpop.f32.mrb[0].mxu0
  %v312 = vadd.f32 %v263, %v311
  %v313 = vpop.f32.mrb[0].mxu0
  %v314 = vpop.f32.mrb[0].mxu0
  %v315 = vadd.f32 %v266, %v314
  %v316 = vpop.f32.mrb[0].mxu0
  %317 = vmatprep.mubr.bf16.mxu0 0
  %318 = vmatmul.mubr.bf16.gmra.mrb[0].mxu0 %v226
  %v319 = vpop.f32.mrb[0].mxu0
  %v320 = vadd.f32 %v271, %v319
  %v321 = vpop.f32.mrb[0].mxu0
  %v322 = vpop.f32.mrb[0].mxu0
  %v323 = vadd.f32 %v274, %v322
  %v324 = vpop.f32.mrb[0].mxu0
  %325 = vdwg.mxu0
  %v326 = vmax.f32 %v312, 0.0
  %v327 = vmax.f32 %v315, 0.0
  %v328 = vmax.f32 %v320, 0.0
  %v329 = vmax.f32 %v323, 0.0
  %v330 = vpack.c.bf16 %v327, %v326
  %v331 = vpack.c.bf16 %v329, %v328
  %v334 = vunpack.c.l.b16 %v330
  %v335 = vunpack.c.h.b16 %v330
  %v336 = vunpack.c.l.b16 %v331
  %v337 = vunpack.c.h.b16 %v331
  %v338 = vpack.c.b16 %v334, %v334
  %v339 = vpack.c.b16 %v335, %v335
  %v340 = vpack.c.b16 %v336, %v336
  %v341 = vpack.c.b16 %v337, %v337
  %346 = vst [vmem:[%s3] sm:$0xf] %v338
  %347 = vst [vmem:[%s3 + $0x4] sm:$0xf] %v339
  %348 = vst [vmem:[%s3 + $0x8] sm:$0xf] %v340
  %349 = vst [vmem:[%s3 + $0xc] sm:$0xf] %v341
  // Predicated region
  $region14: #{feature_net_forward.15} parent=0 // pred_check
    _
  $region15: #{feature_net_forward.15} parent=0 // pred_check_branch
    %351 = sbr.rel (0) target = $region17
  $region16: #{feature_net_forward.15} parent=0 // pred_region
    _
  $region17: #{feature_net_forward.15} parent=0 // pred_fallthru
    _
  // Predicated region
  $region18: #{feature_net_forward.15} parent=0 // pred_check
    _
  $region19: #{feature_net_forward.15} parent=0 // pred_check_branch
    %353 = sbr.rel (0) target = $region21
  $region20: #{feature_net_forward.15} parent=0 // pred_region
    _
  $region21: #{feature_net_forward.15} parent=0 // pred_fallthru
    _

// kernel: feature_net_forward.17
$region0: #{feature_net_forward.17}
  #allocation0 [shape = 'u32[]', space=smem, size = 0x4, offset = 0x4, fixed_abs, tag = 'smem constant byte address 0x4 - core index']
  #allocation1 [shape = 'u32[144,128]{1,0:T(1,128)}', space=vmem, size = 0x12000, scoped, tag = 'internal scratch']
  %s0 = inlined_call_operand.vmem [shape: bf16[32,288], index: 0, kind: input, shape index: {}]
  %s1 = inlined_call_operand.vmem [shape: bf16[288,128], index: 1, kind: input, shape index: {}]
  %s2 = inlined_call_operand.vmem [shape: f32[32,1], index: 2, kind: input, shape index: {}]
  %s3 = inlined_call_operand.vmem [shape: f32[32,128], index: 3, kind: output, shape index: {}]
  %s4 = sld [smem:[#allocation0]]
  $region22: #{feature_net_forward.17} parent=0
    _
  %s6 = ssub.s32 1, %s4
  %s7 = scalar_select 0, %s6, %s4
  // Predicated region
  $region2: #{feature_net_forward.17} parent=0 // pred_check
    _
  $region3: #{feature_net_forward.17} parent=0 // pred_check_branch
    %9 = sbr.rel (0) target = $region5
  $region4: #{feature_net_forward.17} parent=0 // pred_region
    _
  $region5: #{feature_net_forward.17} parent=0 // pred_fallthru
    _
  // Predicated region
  $region6: #{feature_net_forward.17} parent=0 // pred_check
    _
  $region7: #{feature_net_forward.17} parent=0 // pred_check_branch
    %11 = sbr.rel (0) target = $region9
  $region8: #{feature_net_forward.17} parent=0 // pred_region
    _
  $region9: #{feature_net_forward.17} parent=0 // pred_fallthru
    _
  // Predicated region
  $region10: #{feature_net_forward.17} parent=0 // pred_check
    _
  $region11: #{feature_net_forward.17} parent=0 // pred_check_branch
    %13 = sbr.rel (0) target = $region13
  $region12: #{feature_net_forward.17} parent=0 // pred_region
    _
  $region13: #{feature_net_forward.17} parent=0 // pred_fallthru
    _
  %v15 = vld [vmem:[%s0] sm:$0xff]
  %v16 = vld [vmem:[%s0 + $0x8] sm:$0xf]
  %v17 = vld [vmem:[%s0 + $0xc] sm:$0xff]
  %v18 = vld [vmem:[%s0 + $0x14] sm:$0xf]
  %v19 = vld [vmem:[%s0 + $0x18] sm:$0xff]
  %v20 = vld [vmem:[%s0 + $0x20] sm:$0xf]
  %v21 = vld [vmem:[%s0 + $0x24] sm:$0xff]
  %v22 = vld [vmem:[%s0 + $0x2c] sm:$0xf]
  %v23 = vld [vmem:[%s1] sm:$0xf]
  %v24 = vld [vmem:[%s1 + $0x4] sm:$0xf]
  %v25 = vld [vmem:[%s1 + $0x8] sm:$0xf]
  %v26 = vld [vmem:[%s1 + $0xc] sm:$0xf]
  %v27 = vld [vmem:[%s1 + $0x10] sm:$0xf]
  %v28 = vld [vmem:[%s1 + $0x14] sm:$0xf]
  %v29 = vld [vmem:[%s1 + $0x18] sm:$0xf]
  %v30 = vld [vmem:[%s1 + $0x1c] sm:$0xf]
  %v31 = vld [vmem:[%s1 + $0x20] sm:$0xf]
  %v32 = vld [vmem:[%s1 + $0x24] sm:$0xf]
  %v33 = vld [vmem:[%s1 + $0x28] sm:$0xf]
  %v34 = vld [vmem:[%s1 + $0x2c] sm:$0xf]
  %v35 = vld [vmem:[%s1 + $0x30] sm:$0xf]
  %v36 = vld [vmem:[%s1 + $0x34] sm:$0xf]
  %v37 = vld [vmem:[%s1 + $0x38] sm:$0xf]
  %v38 = vld [vmem:[%s1 + $0x3c] sm:$0xf]
  %v39 = vld [vmem:[%s1 + $0x40] sm:$0xf]
  %v40 = vld [vmem:[%s1 + $0x44] sm:$0xf]
  %v41 = vld [vmem:[%s1 + $0x48] sm:$0xf]
  %v42 = vld [vmem:[%s1 + $0x4c] sm:$0xf]
  %v43 = vld [vmem:[%s1 + $0x50] sm:$0xf]
  %v44 = vld [vmem:[%s1 + $0x54] sm:$0xf]
  %v45 = vld [vmem:[%s1 + $0x58] sm:$0xf]
  %v46 = vld [vmem:[%s1 + $0x5c] sm:$0xf]
  %v47 = vld [vmem:[%s1 + $0x60] sm:$0xf]
  %v48 = vld [vmem:[%s1 + $0x64] sm:$0xf]
  %v49 = vld [vmem:[%s1 + $0x68] sm:$0xf]
  %v50 = vld [vmem:[%s1 + $0x6c] sm:$0xf]
  %v51 = vld [vmem:[%s1 + $0x70] sm:$0xf]
  %v52 = vld [vmem:[%s1 + $0x74] sm:$0xf]
  %v53 = vld [vmem:[%s1 + $0x78] sm:$0xf]
  %v54 = vld [vmem:[%s1 + $0x7c] sm:$0xf]
  %v55 = vld [vmem:[%s1 + $0x80] sm:$0xf]
  %v56 = vld [vmem:[%s1 + $0x84] sm:$0xf]
  %v57 = vld [vmem:[%s1 + $0x88] sm:$0xf]
  %v58 = vld [vmem:[%s1 + $0x8c] sm:$0xf]
  %v59 = vld [vmem:[%s2] sm:$0xff]
  %v60 = vld [vmem:[%s2 + $0x8] sm:$0xff]
  %v61 = vld [vmem:[%s2 + $0x10] sm:$0xff]
  %v62 = vld [vmem:[%s2 + $0x18] sm:$0xff]
  %64 = vset.pattern.permute.xlu0 0
  %65 = vperm.xlu0 %64, %v59
  %v66 = vpop.permute.xlu0 %65
  %69 = vset.pattern.permute.xlu0 0
  %70 = vperm.xlu0 %69, %v60
  %v71 = vpop.permute.xlu0 %70
  %74 = vset.pattern.permute.xlu0 0
  %75 = vperm.xlu0 %74, %v61
  %v76 = vpop.permute.xlu0 %75
  %79 = vset.pattern.permute.xlu0 0
  %80 = vperm.xlu0 %79, %v62
  %v81 = vpop.permute.xlu0 %80
  %v91 = vunpack.c.l.b16 %v15
  %v92 = vunpack.c.h.b16 %v15
  %v93 = vunpack.c.l.b16 %v16
  %v94 = vunpack.c.l.b16 %v17
  %v95 = vunpack.c.h.b16 %v17
  %v96 = vunpack.c.l.b16 %v18
  %v97 = vunpack.c.l.b16 %v19
  %v98 = vunpack.c.h.b16 %v19
  %v99 = vunpack.c.l.b16 %v20
  %v100 = vunpack.c.l.b16 %v21
  %v101 = vunpack.c.h.b16 %v21
  %v102 = vunpack.c.l.b16 %v22
  %v103 = vpack.c.b16 %v94, %v91
  %v104 = vpack.c.b16 %v95, %v92
  %v105 = vpack.c.b16 %v96, %v93
  %v106 = vpack.c.b16 %v100, %v97
  %v107 = vpack.c.b16 %v101, %v98
  %v108 = vpack.c.b16 %v102, %v99
  %v149 = vunpack.c.l.b16 %v23
  %v150 = vunpack.c.l.b16 %v24
  %v151 = vunpack.c.l.b16 %v25
  %v152 = vunpack.c.l.b16 %v26
  %v153 = vunpack.c.l.b16 %v27
  %v154 = vunpack.c.l.b16 %v28
  %v155 = vunpack.c.l.b16 %v29
  %v156 = vunpack.c.l.b16 %v30
  %v157 = vunpack.c.l.b16 %v31
  %v158 = vunpack.c.l.b16 %v32
  %v159 = vunpack.c.l.b16 %v33
  %v160 = vunpack.c.l.b16 %v34
  %v161 = vunpack.c.l.b16 %v35
  %v162 = vunpack.c.l.b16 %v36
  %v163 = vunpack.c.l.b16 %v37
  %v164 = vunpack.c.l.b16 %v38
  %v165 = vunpack.c.l.b16 %v39
  %v166 = vunpack.c.l.b16 %v40
  %v167 = vunpack.c.l.b16 %v41
  %v168 = vunpack.c.l.b16 %v42
  %v169 = vunpack.c.l.b16 %v43
  %v170 = vunpack.c.l.b16 %v44
  %v171 = vunpack.c.l.b16 %v45
  %v172 = vunpack.c.l.b16 %v46
  %v173 = vunpack.c.l.b16 %v47
  %v174 = vunpack.c.l.b16 %v48
  %v175 = vunpack.c.l.b16 %v49
  %v176 = vunpack.c.l.b16 %v50
  %v177 = vunpack.c.l.b16 %v51
  %v178 = vunpack.c.l.b16 %v52
  %v179 = vunpack.c.l.b16 %v53
  %v180 = vunpack.c.l.b16 %v54
  %v181 = vunpack.c.l.b16 %v55
  %v182 = vunpack.c.l.b16 %v56
  %v183 = vunpack.c.l.b16 %v57
  %v184 = vunpack.c.l.b16 %v58
  %v185 = vpack.c.b16 %v150, %v149
  %v186 = vpack.c.b16 %v152, %v151
  %v187 = vpack.c.b16 %v154, %v153
  %v188 = vpack.c.b16 %v156, %v155
  %v189 = vpack.c.b16 %v158, %v157
  %v190 = vpack.c.b16 %v160, %v159
  %v191 = vpack.c.b16 %v162, %v161
  %v192 = vpack.c.b16 %v164, %v163
  %v193 = vpack.c.b16 %v166, %v165
  %v194 = vpack.c.b16 %v168, %v167
  %v195 = vpack.c.b16 %v170, %v169
  %v196 = vpack.c.b16 %v172, %v171
  %v197 = vpack.c.b16 %v174, %v173
  %v198 = vpack.c.b16 %v176, %v175
  %v199 = vpack.c.b16 %v178, %v177
  %v200 = vpack.c.b16 %v180, %v179
  %v201 = vpack.c.b16 %v182, %v181
  %v202 = vpack.c.b16 %v184, %v183
  %vm221 = vcmask 261120
  %v223 = vsel %vm221, %v105, 0
  %v226 = vsel %vm221, %v108, 0
  %228 = vmatprep.subr.bf16.mxu0 0
  %229 = vmatpush1.bf16.msra.mxu0 %v185
  %230 = vmatprep.subr.bf16.mxu0 0
  %231 = vmatpush1.bf16.msra.mxu0 %v186
  %232 = vmatprep.subr.bf16.mxu0 0
  %233 = vmatpush1.bf16.msra.mxu0 %v187
  %234 = vmatprep.subr.bf16.mxu0 0
  %235 = vmatpush1.bf16.msra.mxu0 %v188
  %236 = vmatprep.subr.bf16.mxu0 0
  %237 = vmatpush1.bf16.msra.mxu0 %v189
  %238 = vmatprep.subr.bf16.mxu0 0
  %239 = vmatpush1.bf16.msra.mxu0 %v190
  %240 = vmatprep.subr.bf16.mxu0 0
  %241 = vmatpush1.bf16.msra.mxu0 %v191
  %242 = vmatprep.subr.bf16.mxu0 0
  %243 = vmatpush1.bf16.msra.mxu0 %v192
  %244 = vmatprep.subr.bf16.mxu0 0
  %245 = vmatpush1.bf16.msra.mxu0 %v193
  %246 = vmatprep.subr.bf16.mxu0 0
  %247 = vmatpush1.bf16.msra.mxu0 %v194
  %248 = vmatprep.subr.bf16.mxu0 0
  %249 = vmatpush1.bf16.msra.mxu0 %v195
  %250 = vmatprep.subr.bf16.mxu0 0
  %251 = vmatpush1.bf16.msra.mxu0 %v196
  %252 = vmatprep.subr.bf16.mxu0 0
  %253 = vmatpush1.bf16.msra.mxu0 %v197
  %254 = vmatprep.subr.bf16.mxu0 0
  %255 = vmatpush1.bf16.msra.mxu0 %v198
  %256 = vmatprep.subr.bf16.mxu0 0
  %257 = vmatpush1.bf16.msra.mxu0 %v199
  %258 = vmatprep.subr.bf16.mxu0 0
  %259 = vmatpush1.bf16.msra.mxu0 %v200
  %260 = vmatprep.mubr.bf16.mxu0 %v104
  %261 = vmatmul.mubr.bf16.gmra.mrb[0].mxu0 %v103
  %v262 = vpop.f32.mrb[0].mxu0
  %v263 = vadd.f32 %v66, %v262
  %v264 = vpop.f32.mrb[0].mxu0
  %v265 = vpop.f32.mrb[0].mxu0
  %v266 = vadd.f32 %v71, %v265
  %v267 = vpop.f32.mrb[0].mxu0
  %268 = vmatprep.mubr.bf16.mxu0 %v107
  %269 = vmatmul.mubr.bf16.gmra.mrb[0].mxu0 %v106
  %v270 = vpop.f32.mrb[0].mxu0
  %v271 = vadd.f32 %v76, %v270
  %v272 = vpop.f32.mrb[0].mxu0
  %v273 = vpop.f32.mrb[0].mxu0
  %v274 = vadd.f32 %v81, %v273
  %v275 = vpop.f32.mrb[0].mxu0
  %276 = vdwg.mxu0
  %277 = vmatprep.subr.bf16.mxu0 0
  %278 = vmatpush1.bf16.msra.mxu0 %v201
  %279 = vmatprep.subr.bf16.mxu0 0
  %280 = vmatpush1.bf16.msra.mxu0 %v202
  %281 = vmatprep.subr.bf16.mxu0 0
  %282 = vmatpush1.bf16.msra.mxu0 0
  %283 = vmatprep.subr.bf16.mxu0 0
  %284 = vmatpush1.bf16.msra.mxu0 0
  %285 = vmatprep.subr.bf16.mxu0 0
  %286 = vmatpush1.bf16.msra.mxu0 0
  %287 = vmatprep.subr.bf16.mxu0 0
  %288 = vmatpush1.bf16.msra.mxu0 0
  %289 = vmatprep.subr.bf16.mxu0 0
  %290 = vmatpush1.bf16.msra.mxu0 0
  %291 = vmatprep.subr.bf16.mxu0 0
  %292 = vmatpush1.bf16.msra.mxu0 0
  %293 = vmatprep.subr.bf16.mxu0 0
  %294 = vmatpush1.bf16.msra.mxu0 0
  %295 = vmatprep.subr.bf16.mxu0 0
  %296 = vmatpush1.bf16.msra.mxu0 0
  %297 = vmatprep.subr.bf16.mxu0 0
  %298 = vmatpush1.bf16.msra.mxu0 0
  %299 = vmatprep.subr.bf16.mxu0 0
  %300 = vmatpush1.bf16.msra.mxu0 0
  %301 = vmatprep.subr.bf16.mxu0 0
  %302 = vmatpush1.bf16.msra.mxu0 0
  %303 = vmatprep.subr.bf16.mxu0 0
  %304 = vmatpush1.bf16.msra.mxu0 0
  %305 = vmatprep.subr.bf16.mxu0 0
  %306 = vmatpush1.bf16.msra.mxu0 0
  %307 = vmatprep.subr.bf16.mxu0 0
  %308 = vmatpush1.bf16.msra.mxu0 0
  %309 = vmatprep.mubr.bf16.mxu0 0
  %310 = vmatmul.mubr.bf16.gmra.mrb[0].mxu0 %v223
  %v311 = vpop.f32.mrb[0].mxu0
  %v312 = vadd.f32 %v263, %v311
  %v313 = vpop.f32.mrb[0].mxu0
  %v314 = vpop.f32.mrb[0].mxu0
  %v315 = vadd.f32 %v266, %v314
  %v316 = vpop.f32.mrb[0].mxu0
  %317 = vmatprep.mubr.bf16.mxu0 0
  %318 = vmatmul.mubr.bf16.gmra.mrb[0].mxu0 %v226
  %v319 = vpop.f32.mrb[0].mxu0
  %v320 = vadd.f32 %v271, %v319
  %v321 = vpop.f32.mrb[0].mxu0
  %v322 = vpop.f32.mrb[0].mxu0
  %v323 = vadd.f32 %v274, %v322
  %v324 = vpop.f32.mrb[0].mxu0
  %325 = vdwg.mxu0
  %326 = vst [vmem:[%s3] sm:$0xff] %v312
  %327 = vst [vmem:[%s3 + $0x8] sm:$0xff] %v315
  %328 = vst [vmem:[%s3 + $0x10] sm:$0xff] %v320
  %329 = vst [vmem:[%s3 + $0x18] sm:$0xff] %v323
  // Predicated region
  $region14: #{feature_net_forward.17} parent=0 // pred_check
    _
  $region15: #{feature_net_forward.17} parent=0 // pred_check_branch
    %331 = sbr.rel (0) target = $region17
  $region16: #{feature_net_forward.17} parent=0 // pred_region
    _
  $region17: #{feature_net_forward.17} parent=0 // pred_fallthru
    _
  // Predicated region
  $region18: #{feature_net_forward.17} parent=0 // pred_check
    _
  $region19: #{feature_net_forward.17} parent=0 // pred_check_branch
    %333 = sbr.rel (0) target = $region21
  $region20: #{feature_net_forward.17} parent=0 // pred_region
    _
  $region21: #{feature_net_forward.17} parent=0 // pred_fallthru
    _

</llo_original>
